<compile_context>
chip_gen: v7x
topology: tpu7x:2x2x1
jax: 0.10.0
libtpu: 0.0.40
codegen_flags: <defaults>
</compile_context>

<pallas_src>
import jax
import jax.numpy as jnp
from jax import lax
from jax.experimental import pallas as pl
from jax.experimental.pallas import tpu as pltpu


def _round_up(x, m):
    return (x + m - 1) // m * m


def _make_conv_bn_relu_kernel(tap_offsets, L):
    """Kernel closure over the static per-tap flat offsets and lane length L."""

    def kernel(x_ref, w_ref, b_ref, o_ref):
        # x_ref: (1, C_in, L)  -- padded NCHW input, spatial flattened on lanes
        # w_ref: (n_taps, C_out, C_in) -- BN-folded per-tap weight matrices
        # b_ref: (C_out, 1)    -- BN-folded bias column
        # o_ref: (1, C_out, L) -- lane-dense "wide" conv output
        x = x_ref[0]                                   # (C_in, L) f32
        c_out = o_ref.shape[1]
        acc = jnp.zeros((c_out, L), jnp.float32)
        for t, off in enumerate(tap_offsets):          # static unrolled loop (k*k taps)
            # Lane rotation so column j of xs holds x[:, j + off] (garbage in the
            # wrapped tail columns is discarded by the wrapper slice).
            xs = x if off == 0 else pltpu.roll(x, shift=L - off, axis=1)
            acc = acc + jnp.dot(w_ref[t], xs, preferred_element_type=jnp.float32)
        y = jnp.maximum(acc + b_ref[...], 0.0)         # fused BN bias + ReLU
        o_ref[0] = y.astype(o_ref.dtype)

    return kernel


def conv2d_batchnorm_relu_pallas(x, conv_w, conv_b, bn_gamma, bn_beta, bn_mean,
                                 bn_var, *, stride=1, padding=1, dilation=1,
                                 eps=1e-5):
    """x: (B, C_in, H, W) NCHW; conv_w: (C_out, C_in, kH, kW); rest: (C_out,)."""
    if stride != 1:
        raise NotImplementedError("Pallas path supports stride=1 only")  # TODO(synk)

    B, C_in, H, W = x.shape
    C_out, C_in_w, kH, kW = conv_w.shape
    assert C_in_w == C_in

    P = int(padding)
    d = int(dilation)
    Hp, Wp = H + 2 * P, W + 2 * P
    H_out = Hp - d * (kH - 1)
    W_out = Wp - d * (kW - 1)

    # ---- Fold BatchNorm (running stats) + conv bias into weights / bias ----
    inv_std = 1.0 / jnp.sqrt(bn_var.astype(jnp.float32) + eps)
    scale = bn_gamma.astype(jnp.float32) * inv_std                      # (C_out,)
    w_f = conv_w.astype(jnp.float32) * scale[:, None, None, None]
    b_f = (conv_b.astype(jnp.float32) - bn_mean.astype(jnp.float32)) * scale \
          + bn_beta.astype(jnp.float32)

    # One fused weight tensor: (kH*kW, C_out, C_in)  -> single DMA, one per-tap slice.
    w_taps = jnp.transpose(w_f, (2, 3, 0, 1)).reshape(kH * kW, C_out, C_in)
    b_col = b_f.reshape(C_out, 1)

    # ---- NCHW stays NCHW: pad spatial, flatten spatial onto lanes, pad to x128 ----
    HW_pad = Hp * Wp
    L = _round_up(HW_pad, 128)
    x_pad = jnp.pad(x, ((0, 0), (0, 0), (P, P), (P, P)))
    x_flat = jnp.pad(x_pad.reshape(B, C_in, HW_pad).astype(jnp.float32),
                     ((0, 0), (0, 0), (0, L - HW_pad)))

    tap_offsets = tuple(kh * d * Wp + kw * d
                        for kh in range(kH) for kw in range(kW))
    kernel = _make_conv_bn_relu_kernel(tap_offsets, L)

    out_flat = pl.pallas_call(
        kernel,
        out_shape=jax.ShapeDtypeStruct((B, C_out, L), x.dtype),
        grid_spec=pltpu.PrefetchScalarGridSpec(
            num_scalar_prefetch=0,
            grid=(B,),
            in_specs=[
                pl.BlockSpec((1, C_in, L), lambda b: (b, 0, 0)),          # x
                pl.BlockSpec((kH * kW, C_out, C_in), lambda b: (0, 0, 0)),  # fused W
                pl.BlockSpec((C_out, 1), lambda b: (0, 0)),               # fused bias
            ],
            out_specs=pl.BlockSpec((1, C_out, L), lambda b: (b, 0, 0)),
        ),
        compiler_params=pltpu.CompilerParams(
            dimension_semantics=("parallel",)),
    )(x_flat, w_taps, b_col)

    # Wide columns -> (H_out, Wp); drop the wrap-around columns -> (H_out, W_out).
    out = out_flat[:, :, :H_out * Wp].reshape(B, C_out, H_out, Wp)[:, :, :, :W_out]
    return out


def conv2d_batchnorm_relu_ref(x, conv_w, conv_b, bn_gamma, bn_beta, bn_mean,
                              bn_var, *, stride=1, padding=1, dilation=1,
                              eps=1e-5):
    """Pure-JAX reference mirroring the PyTorch forward (eval-mode BatchNorm)."""
    y = lax.conv_general_dilated(
        x, conv_w,
        window_strides=(stride, stride),
        padding=[(padding, padding), (padding, padding)],
        rhs_dilation=(dilation, dilation),
        dimension_numbers=("NCHW", "OIHW", "NCHW"))
    y = y + conv_b[None, :, None, None]
    inv_std = 1.0 / jnp.sqrt(bn_var + eps)
    y = (y - bn_mean[None, :, None, None]) * (bn_gamma * inv_std)[None, :, None, None] \
        + bn_beta[None, :, None, None]
    return jnp.maximum(y, 0.0)


if __name__ == "__main__":
    B, C_in, C_out, H, W = 2, 4, 8, 16, 16
    k, stride, padding, dilation = 3, 1, 1, 1
    eps = 1e-5

    key = jax.random.PRNGKey(0)
    kx, kw, kb, kg, kbt, km, kv = jax.random.split(key, 7)

    x = jax.random.normal(kx, (B, C_in, H, W), jnp.float32)

    bound = 1.0 / (C_in * k * k) ** 0.5
    conv_w = jax.random.uniform(kw, (C_out, C_in, k, k), jnp.float32, -bound, bound)
    conv_b = jax.random.uniform(kb, (C_out,), jnp.float32, -bound, bound)

    bn_gamma = jax.random.uniform(kg, (C_out,), jnp.float32, 0.5, 1.5)
    bn_beta = 0.1 * jax.random.normal(kbt, (C_out,), jnp.float32)
    bn_mean = 0.1 * jax.random.normal(km, (C_out,), jnp.float32)
    bn_var = jax.random.uniform(kv, (C_out,), jnp.float32, 0.5, 1.5)

    out = jax.block_until_ready(conv2d_batchnorm_relu_pallas(
        x, conv_w, conv_b, bn_gamma, bn_beta, bn_mean, bn_var,
        stride=stride, padding=padding, dilation=dilation, eps=eps))
    ref = conv2d_batchnorm_relu_ref(
        x, conv_w, conv_b, bn_gamma, bn_beta, bn_mean, bn_var,
        stride=stride, padding=padding, dilation=dilation, eps=eps)

    assert out.shape == (B, C_out, H, W) and out.dtype == x.dtype
    err = float(jnp.max(jnp.abs(out - ref)))
    assert jnp.allclose(out, ref, atol=1e-4, rtol=1e-4), err
    print("KERNEL_OK")
</pallas_src>

<mosaic_0001>
module attributes {stable_mosaic.version = 11 : i64} {
  func.func @kernel(%arg0: i32, %arg1: memref<1x4x384xf32, #tpu.memory_space<vmem>>, %arg2: memref<9x8x4xf32, #tpu.memory_space<vmem>>, %arg3: memref<8x1xf32, #tpu.memory_space<vmem>>, %arg4: memref<1x8x384xf32, #tpu.memory_space<vmem>>) attributes {dimension_semantics = [#tpu.dimension_semantics<parallel>], iteration_bounds = array<i64: 2>, scalar_prefetch = 0 : i64, scratch_operands = 0 : i64, tpu.core_type = #tpu.core_type<tc>, window_params = [{transform_indices = @transform_0, window_bounds = array<i64: 1, 4, 384>}, {pipeline_mode = #tpu.pipeline_mode<synchronous>, transform_indices = @transform_1, window_bounds = array<i64: 9, 8, 4>}, {pipeline_mode = #tpu.pipeline_mode<synchronous>, transform_indices = @transform_2, window_bounds = array<i64: 8, 1>}, {transform_indices = @transform_3, window_bounds = array<i64: 1, 8, 384>}]} {
    %c0 = arith.constant 0 : index
    %c0_0 = arith.constant 0 : index
    %c0_1 = arith.constant 0 : index
    %0 = vector.load %arg1[%c0, %c0_0, %c0_1] : memref<1x4x384xf32, #tpu.memory_space<vmem>>, vector<1x4x384xf32>
    %1 = vector.shape_cast %0 : vector<1x4x384xf32> to vector<4x384xf32>
    %cst = arith.constant 0.000000e+00 : f32
    %2 = vector.broadcast %cst : f32 to vector<8x384xf32>
    %c0_2 = arith.constant 0 : index
    %c0_3 = arith.constant 0 : index
    %c0_4 = arith.constant 0 : index
    %3 = vector.load %arg2[%c0_2, %c0_3, %c0_4] : memref<9x8x4xf32, #tpu.memory_space<vmem>>, vector<1x8x4xf32>
    %4 = vector.shape_cast %3 : vector<1x8x4xf32> to vector<8x4xf32>
    %cst_5 = arith.constant dense<0.000000e+00> : vector<8x384xf32>
    %5 = tpu.matmul %4, %1, %cst_5 {dimension_numbers = #tpu.dot_dimension_numbers<[1], [0], [0], [1], [0, 0, 1, 1], [], []>} : vector<8x4xf32>, vector<4x384xf32>, vector<8x384xf32> -> vector<8x384xf32>
    %6 = arith.addf %2, %5 : vector<8x384xf32>
    %c383_i32 = arith.constant 383 : i32
    %7 = tpu.dynamic_rotate %1 by %c383_i32 dim 1 : vector<4x384xf32>, i32 -> vector<4x384xf32>
    %c1 = arith.constant 1 : index
    %c0_6 = arith.constant 0 : index
    %c0_7 = arith.constant 0 : index
    %8 = vector.load %arg2[%c1, %c0_6, %c0_7] : memref<9x8x4xf32, #tpu.memory_space<vmem>>, vector<1x8x4xf32>
    %9 = vector.shape_cast %8 : vector<1x8x4xf32> to vector<8x4xf32>
    %cst_8 = arith.constant dense<0.000000e+00> : vector<8x384xf32>
    %10 = tpu.matmul %9, %7, %cst_8 {dimension_numbers = #tpu.dot_dimension_numbers<[1], [0], [0], [1], [0, 0, 1, 1], [], []>} : vector<8x4xf32>, vector<4x384xf32>, vector<8x384xf32> -> vector<8x384xf32>
    %11 = arith.addf %6, %10 : vector<8x384xf32>
    %c382_i32 = arith.constant 382 : i32
    %12 = tpu.dynamic_rotate %1 by %c382_i32 dim 1 : vector<4x384xf32>, i32 -> vector<4x384xf32>
    %c2 = arith.constant 2 : index
    %c0_9 = arith.constant 0 : index
    %c0_10 = arith.constant 0 : index
    %13 = vector.load %arg2[%c2, %c0_9, %c0_10] : memref<9x8x4xf32, #tpu.memory_space<vmem>>, vector<1x8x4xf32>
    %14 = vector.shape_cast %13 : vector<1x8x4xf32> to vector<8x4xf32>
    %cst_11 = arith.constant dense<0.000000e+00> : vector<8x384xf32>
    %15 = tpu.matmul %14, %12, %cst_11 {dimension_numbers = #tpu.dot_dimension_numbers<[1], [0], [0], [1], [0, 0, 1, 1], [], []>} : vector<8x4xf32>, vector<4x384xf32>, vector<8x384xf32> -> vector<8x384xf32>
    %16 = arith.addf %11, %15 : vector<8x384xf32>
    %c366_i32 = arith.constant 366 : i32
    %17 = tpu.dynamic_rotate %1 by %c366_i32 dim 1 : vector<4x384xf32>, i32 -> vector<4x384xf32>
    %c3 = arith.constant 3 : index
    %c0_12 = arith.constant 0 : index
    %c0_13 = arith.constant 0 : index
    %18 = vector.load %arg2[%c3, %c0_12, %c0_13] : memref<9x8x4xf32, #tpu.memory_space<vmem>>, vector<1x8x4xf32>
    %19 = vector.shape_cast %18 : vector<1x8x4xf32> to vector<8x4xf32>
    %cst_14 = arith.constant dense<0.000000e+00> : vector<8x384xf32>
    %20 = tpu.matmul %19, %17, %cst_14 {dimension_numbers = #tpu.dot_dimension_numbers<[1], [0], [0], [1], [0, 0, 1, 1], [], []>} : vector<8x4xf32>, vector<4x384xf32>, vector<8x384xf32> -> vector<8x384xf32>
    %21 = arith.addf %16, %20 : vector<8x384xf32>
    %c365_i32 = arith.constant 365 : i32
    %22 = tpu.dynamic_rotate %1 by %c365_i32 dim 1 : vector<4x384xf32>, i32 -> vector<4x384xf32>
    %c4 = arith.constant 4 : index
    %c0_15 = arith.constant 0 : index
    %c0_16 = arith.constant 0 : index
    %23 = vector.load %arg2[%c4, %c0_15, %c0_16] : memref<9x8x4xf32, #tpu.memory_space<vmem>>, vector<1x8x4xf32>
    %24 = vector.shape_cast %23 : vector<1x8x4xf32> to vector<8x4xf32>
    %cst_17 = arith.constant dense<0.000000e+00> : vector<8x384xf32>
    %25 = tpu.matmul %24, %22, %cst_17 {dimension_numbers = #tpu.dot_dimension_numbers<[1], [0], [0], [1], [0, 0, 1, 1], [], []>} : vector<8x4xf32>, vector<4x384xf32>, vector<8x384xf32> -> vector<8x384xf32>
    %26 = arith.addf %21, %25 : vector<8x384xf32>
    %c364_i32 = arith.constant 364 : i32
    %27 = tpu.dynamic_rotate %1 by %c364_i32 dim 1 : vector<4x384xf32>, i32 -> vector<4x384xf32>
    %c5 = arith.constant 5 : index
    %c0_18 = arith.constant 0 : index
    %c0_19 = arith.constant 0 : index
    %28 = vector.load %arg2[%c5, %c0_18, %c0_19] : memref<9x8x4xf32, #tpu.memory_space<vmem>>, vector<1x8x4xf32>
    %29 = vector.shape_cast %28 : vector<1x8x4xf32> to vector<8x4xf32>
    %cst_20 = arith.constant dense<0.000000e+00> : vector<8x384xf32>
    %30 = tpu.matmul %29, %27, %cst_20 {dimension_numbers = #tpu.dot_dimension_numbers<[1], [0], [0], [1], [0, 0, 1, 1], [], []>} : vector<8x4xf32>, vector<4x384xf32>, vector<8x384xf32> -> vector<8x384xf32>
    %31 = arith.addf %26, %30 : vector<8x384xf32>
    %c348_i32 = arith.constant 348 : i32
    %32 = tpu.dynamic_rotate %1 by %c348_i32 dim 1 : vector<4x384xf32>, i32 -> vector<4x384xf32>
    %c6 = arith.constant 6 : index
    %c0_21 = arith.constant 0 : index
    %c0_22 = arith.constant 0 : index
    %33 = vector.load %arg2[%c6, %c0_21, %c0_22] : memref<9x8x4xf32, #tpu.memory_space<vmem>>, vector<1x8x4xf32>
    %34 = vector.shape_cast %33 : vector<1x8x4xf32> to vector<8x4xf32>
    %cst_23 = arith.constant dense<0.000000e+00> : vector<8x384xf32>
    %35 = tpu.matmul %34, %32, %cst_23 {dimension_numbers = #tpu.dot_dimension_numbers<[1], [0], [0], [1], [0, 0, 1, 1], [], []>} : vector<8x4xf32>, vector<4x384xf32>, vector<8x384xf32> -> vector<8x384xf32>
    %36 = arith.addf %31, %35 : vector<8x384xf32>
    %c347_i32 = arith.constant 347 : i32
    %37 = tpu.dynamic_rotate %1 by %c347_i32 dim 1 : vector<4x384xf32>, i32 -> vector<4x384xf32>
    %c7 = arith.constant 7 : index
    %c0_24 = arith.constant 0 : index
    %c0_25 = arith.constant 0 : index
    %38 = vector.load %arg2[%c7, %c0_24, %c0_25] : memref<9x8x4xf32, #tpu.memory_space<vmem>>, vector<1x8x4xf32>
    %39 = vector.shape_cast %38 : vector<1x8x4xf32> to vector<8x4xf32>
    %cst_26 = arith.constant dense<0.000000e+00> : vector<8x384xf32>
    %40 = tpu.matmul %39, %37, %cst_26 {dimension_numbers = #tpu.dot_dimension_numbers<[1], [0], [0], [1], [0, 0, 1, 1], [], []>} : vector<8x4xf32>, vector<4x384xf32>, vector<8x384xf32> -> vector<8x384xf32>
    %41 = arith.addf %36, %40 : vector<8x384xf32>
    %c346_i32 = arith.constant 346 : i32
    %42 = tpu.dynamic_rotate %1 by %c346_i32 dim 1 : vector<4x384xf32>, i32 -> vector<4x384xf32>
    %c8 = arith.constant 8 : index
    %c0_27 = arith.constant 0 : index
    %c0_28 = arith.constant 0 : index
    %43 = vector.load %arg2[%c8, %c0_27, %c0_28] : memref<9x8x4xf32, #tpu.memory_space<vmem>>, vector<1x8x4xf32>
    %44 = vector.shape_cast %43 : vector<1x8x4xf32> to vector<8x4xf32>
    %cst_29 = arith.constant dense<0.000000e+00> : vector<8x384xf32>
    %45 = tpu.matmul %44, %42, %cst_29 {dimension_numbers = #tpu.dot_dimension_numbers<[1], [0], [0], [1], [0, 0, 1, 1], [], []>} : vector<8x4xf32>, vector<4x384xf32>, vector<8x384xf32> -> vector<8x384xf32>
    %46 = arith.addf %41, %45 : vector<8x384xf32>
    %c0_30 = arith.constant 0 : index
    %c0_31 = arith.constant 0 : index
    %47 = vector.load %arg3[%c0_30, %c0_31] : memref<8x1xf32, #tpu.memory_space<vmem>>, vector<8x1xf32>
    %48 = vector.broadcast %47 : vector<8x1xf32> to vector<8x384xf32>
    %49 = arith.addf %46, %48 : vector<8x384xf32>
    %cst_32 = arith.constant 0.000000e+00 : f32
    %50 = vector.broadcast %cst_32 : f32 to vector<8x384xf32>
    %51 = arith.maximumf %49, %50 : vector<8x384xf32>
    %c0_33 = arith.constant 0 : index
    %c0_34 = arith.constant 0 : index
    %c0_35 = arith.constant 0 : index
    %52 = vector.load %arg4[%c0_33, %c0_34, %c0_35] : memref<1x8x384xf32, #tpu.memory_space<vmem>>, vector<1x8x384xf32>
    %53 = vector.shape_cast %52 : vector<1x8x384xf32> to vector<8x384xf32>
    %54 = vector.shape_cast %51 : vector<8x384xf32> to vector<1x8x384xf32>
    tpu.vector_store %arg4[%c0_33, %c0_34, %c0_35], %54 {strides = array<i32>} : memref<1x8x384xf32, #tpu.memory_space<vmem>>, vector<1x8x384xf32>,
    return
  }
  func.func @transform_0(%arg0: i32) -> (i32, i32, i32) {
    %c0_i32 = arith.constant 0 : i32
    %c0_i32_0 = arith.constant 0 : i32
    %c0_i32_1 = arith.constant 0 : i32
    return %arg0, %c0_i32, %c0_i32_0 : i32, i32, i32
  }
  func.func @transform_1(%arg0: i32) -> (i32, i32, i32) {
    %c0_i32 = arith.constant 0 : i32
    %c0_i32_0 = arith.constant 0 : i32
    %c0_i32_1 = arith.constant 0 : i32
    %c0_i32_2 = arith.constant 0 : i32
    return %c0_i32, %c0_i32_0, %c0_i32_1 : i32, i32, i32
  }
  func.func @transform_2(%arg0: i32) -> (i32, i32) {
    %c0_i32 = arith.constant 0 : i32
    %c0_i32_0 = arith.constant 0 : i32
    %c0_i32_1 = arith.constant 0 : i32
    return %c0_i32, %c0_i32_0 : i32, i32
  }
  func.func @transform_3(%arg0: i32) -> (i32, i32, i32) {
    %c0_i32 = arith.constant 0 : i32
    %c0_i32_0 = arith.constant 0 : i32
    %c0_i32_1 = arith.constant 0 : i32
    return %arg0, %c0_i32, %c0_i32_0 : i32, i32, i32
  }
}

</mosaic_0001>

<llo_original>
// kernel: tpu_custom_call.1
$region0: #{tpu_custom_call.1}
  #allocation0 [shape = 'u32[]', space=smem, size = 0x4, offset = 0x4, fixed_abs, tag = 'smem constant byte address 0x4 - core index']
  #allocation1 [shape = 'u32[144,128]{1,0:T(1,128)}', space=vmem, size = 0x12000, scoped, tag = 'internal scratch']
  %s0 = inlined_call_operand.vmem [shape: f32[2,4,384], index: 0, kind: input, shape index: {}]
  %s1 = inlined_call_operand.vmem [shape: f32[9,8,4], index: 1, kind: input, shape index: {}]
  %s2 = inlined_call_operand.vmem [shape: f32[8,1], index: 2, kind: input, shape index: {}]
  %s3 = inlined_call_operand.hbm [shape: f32[2,8,384], index: 3, kind: output, shape index: {}]
  %s4 = sld [smem:[#allocation0]]
  $region45: #{tpu_custom_call.1} parent=0
    _
  %s6 = ssub.s32 1, %s4
  %s7 = scalar_select 0, %s6, %s4
  $region1: #{tpu_custom_call.1} parent=0
    #allocation2 [shape = 'u8[24576]{0}', space=vmem, size = 0x6000, scoped, tag = 'output window, operand 0']
    #allocation3 [shape = 's32[2]{0}', space=sflag, size = 0x8, scoped, tag = 'scoped memory for tpu_custom_call.1']
    %8 = vsyncpa [#allocation3], 0
    %s9 = scalar_lea.sflag [#allocation3], 1
    %10 = vsyncpa %s9, 0
    loop: start=0, step=1, limit=4
    $region2: #{tpu_custom_call.1} parent=1 // loop_pre_header
      _
    $region3: #{tpu_custom_call.1} parent=1 // loop_header
      %s12 = sphi 0, %s16
      %p13 = scmp.ge.s32.totalorder %s12, 4
      %s22 = sphi 0, %s24
      %s25 = sphi 0, %s22
      %s26 = sphi 0, %s25
      %s42 = sphi 0, %s26
      %s46 = sphi 0, %s46
      %s48 = sphi 0, %s46
      %s49 = sphi 0, %s48
      %s63 = sphi 0, %s49
      %s67 = sphi 0, %s67
      %s69 = sphi 0, %s67
      %s70 = sphi 0, %s69
      %s84 = sphi 0, %s70
      %s90 = sphi 0, %s92
      %s93 = sphi 0, %s90
      %s94 = sphi 0, %s93
      %s110 = sphi 0, %s94
    $region4: #{tpu_custom_call.1} parent=1 // loop_header_branch
      %15 = sbr.rel (%p13) target = $region8
    $region5: #{tpu_custom_call.1} parent=1 // loop_body
      %s17 = ssub.s32 %s12, 1
      %s18 = ssub.s32 %s12, 2
      %s19 = sadd.s32 %s12, 1
      %s20 = ssub.s32 %s12, %s19
      %p21 = scmp.eq.s32.totalorder %s20, 0
      %s23 = sadd.s32 %s22, 1
      %s24 = scalar_select %p21, %s22, %s23
      %p27 = pneg %p21
      %p28 = scmp.eq.s32.totalorder %s12, 1
      %p29 = por %p27, %p28
      %p30 = scmp.ne.s32.totalorder %s22, %s25
      %p31 = scmp.eq.s32.totalorder %s12, 0
      %p32 = por %p30, %p31
      %p33 = scmp.ne.s32.totalorder %s22, %s25
      %p34 = scmp.eq.s32.totalorder %s17, 1
      %p35 = por %p33, %p34
      %p36 = scmp.ne.s32.totalorder %s25, %s26
      %p37 = scmp.eq.s32.totalorder %s17, 0
      %p38 = por %p36, %p37
      %p39 = scmp.ne.s32.totalorder %s25, %s26
      %p40 = scmp.eq.s32.totalorder %s18, 1
      %p41 = por %p39, %p40
      %p43 = scmp.ne.s32.totalorder %s26, %s42
      %p44 = scmp.eq.s32.totalorder %s18, 0
      %p45 = por %p43, %p44
      %s47 = sadd.s32 %s46, 1
      %p50 = scmp.eq.s32.totalorder %s12, 1
      %p51 = scmp.ne.s32.totalorder %s46, %s48
      %p52 = scmp.eq.s32.totalorder %s12, 0
      %p53 = por %p51, %p52
      %p54 = scmp.ne.s32.totalorder %s46, %s48
      %p55 = scmp.eq.s32.totalorder %s17, 1
      %p56 = por %p54, %p55
      %p57 = scmp.ne.s32.totalorder %s48, %s49
      %p58 = scmp.eq.s32.totalorder %s17, 0
      %p59 = por %p57, %p58
      %p60 = scmp.ne.s32.totalorder %s48, %s49
      %p61 = scmp.eq.s32.totalorder %s18, 1
      %p62 = por %p60, %p61
      %p64 = scmp.ne.s32.totalorder %s49, %s63
      %p65 = scmp.eq.s32.totalorder %s18, 0
      %p66 = por %p64, %p65
      %s68 = sadd.s32 %s67, 1
      %p71 = scmp.eq.s32.totalorder %s12, 1
      %p72 = scmp.ne.s32.totalorder %s67, %s69
      %p73 = scmp.eq.s32.totalorder %s12, 0
      %p74 = por %p72, %p73
      %p75 = scmp.ne.s32.totalorder %s67, %s69
      %p76 = scmp.eq.s32.totalorder %s17, 1
      %p77 = por %p75, %p76
      %p78 = scmp.ne.s32.totalorder %s69, %s70
      %p79 = scmp.eq.s32.totalorder %s17, 0
      %p80 = por %p78, %p79
      %p81 = scmp.ne.s32.totalorder %s69, %s70
      %p82 = scmp.eq.s32.totalorder %s18, 1
      %p83 = por %p81, %p82
      %p85 = scmp.ne.s32.totalorder %s70, %s84
      %p86 = scmp.eq.s32.totalorder %s18, 0
      %p87 = por %p85, %p86
      %s88 = ssub.s32 %s12, %s19
      %p89 = scmp.eq.s32.totalorder %s88, 0
      %s91 = sadd.s32 %s90, 1
      %s92 = scalar_select %p89, %s90, %s91
      %p95 = pneg %p89
      %p96 = scmp.eq.s32.totalorder %s12, 1
      %p97 = por %p95, %p96
      %p98 = scmp.ne.s32.totalorder %s90, %s93
      %p99 = scmp.eq.s32.totalorder %s12, 0
      %p100 = por %p98, %p99
      %p101 = scmp.ne.s32.totalorder %s90, %s93
      %p102 = scmp.eq.s32.totalorder %s17, 1
      %p103 = por %p101, %p102
      %p104 = scmp.ne.s32.totalorder %s93, %s94
      %p105 = scmp.eq.s32.totalorder %s17, 0
      %p106 = por %p104, %p105
      %p107 = scmp.ne.s32.totalorder %s93, %s94
      %p108 = scmp.eq.s32.totalorder %s18, 1
      %p109 = por %p107, %p108
      %p111 = scmp.ne.s32.totalorder %s94, %s110
      %p112 = scmp.eq.s32.totalorder %s18, 0
      %p113 = por %p111, %p112
      %p114 = scmp.le.s32.totalorder 1, %s12
      %p115 = scmp.lt.s32.totalorder %s12, 3
      %p116 = pnand %p114, %p115
      %p117 = pneg %p116
      // Predicated region
      $region9: #{tpu_custom_call.1} parent=5 // pred_check
        _
      $region10: #{tpu_custom_call.1} parent=5 // pred_check_branch
        %119 = sbr.rel (%p116) target = $region12
      $region11: #{tpu_custom_call.1} parent=5 // pred_region
        %s120 = ssub.s32 %s12, 1
        // Predicated region
        $region13: #{tpu_custom_call.1} parent=11 // pred_check
          %p121 = pneg %p59
        $region14: #{tpu_custom_call.1} parent=11 // pred_check_branch
          %123 = sbr.rel (%p121) target = $region16
        $region15: #{tpu_custom_call.1} parent=11 // pred_region
          _
        $region16: #{tpu_custom_call.1} parent=11 // pred_fallthru
          _
        // Predicated region
        $region17: #{tpu_custom_call.1} parent=11 // pred_check
          %p124 = pneg %p80
        $region18: #{tpu_custom_call.1} parent=11 // pred_check_branch
          %126 = sbr.rel (%p124) target = $region20
        $region19: #{tpu_custom_call.1} parent=11 // pred_region
          _
        $region20: #{tpu_custom_call.1} parent=11 // pred_fallthru
          _
      $region12: #{tpu_custom_call.1} parent=5 // pred_fallthru
        _
      %p127 = scmp.lt.s32.totalorder %s12, 2
      // Predicated region
      $region21: #{tpu_custom_call.1} parent=5 // pred_check
        %p128 = pneg %p127
      $region22: #{tpu_custom_call.1} parent=5 // pred_check_branch
        %130 = sbr.rel (%p128) target = $region24
      $region23: #{tpu_custom_call.1} parent=5 // pred_region
        // Predicated region
        $region25: #{tpu_custom_call.1} parent=23 // pred_check
          %p131 = pneg %p32
        $region26: #{tpu_custom_call.1} parent=23 // pred_check_branch
          %133 = sbr.rel (%p131) target = $region28
        $region27: #{tpu_custom_call.1} parent=23 // pred_region
          %p134 = scmp.lt.s32.totalorder %s12, 1
          %s135 = scalar_select %p134, %s12, 1
          %s136 = smul.addr %s135, 3
          %s137 = smul.addr %s136, 4
          %s138 = scalar_lea.vmem %s0, %s137
        $region28: #{tpu_custom_call.1} parent=23 // pred_fallthru
          _
      $region24: #{tpu_custom_call.1} parent=5 // pred_fallthru
        _
      %p139 = scmp.le.s32.totalorder 1, %s12
      %p140 = scmp.lt.s32.totalorder %s12, 3
      %p141 = pnand %p139, %p140
      %p142 = pneg %p141
      // Predicated region
      $region29: #{tpu_custom_call.1} parent=5 // pred_check
        _
      $region30: #{tpu_custom_call.1} parent=5 // pred_check_branch
        %144 = sbr.rel (%p141) target = $region32
      $region31: #{tpu_custom_call.1} parent=5 // pred_region
        %s145 = ssub.s32 %s12, 1
        %p146 = scmp.lt.s32.totalorder %s17, 1
        %s147 = scalar_select %p146, %s17, 1
        %s148 = smul.addr %s147, 3
        %s149 = smul.addr %s148, 4
        %s150 = scalar_lea.vmem %s0, %s149
        %p151 = pneg %p38
        %p152 = pneg %p35
        %p153 = pneg %p59
        %p154 = pneg %p56
        %p155 = pneg %p80
        %p156 = pneg %p77
        %p157 = pneg %p106
        %p158 = pneg %p103
        %s159 = sand.u32 %s93, 1
        %s160 = scalar_lea.sflag [#allocation3], %s159
        %s161 = sand.u32 %s93, 1
        %s162 = smul.addr %s161, 24
        %s163 = scalar_lea.vmem [#allocation2], %s162
        %p164 = scmp.lt.s32.totalorder %s17, 1
        %s165 = scalar_select %p164, %s17, 1
        %s166 = smul.addr %s165, 3
        %s167 = smul.addr %s166, 4
        %s168 = scalar_lea.vmem %s0, %s167
        %v169 = vld [vmem:[%s168] sm:$0xff]
        %v170 = vld [vmem:[%s168 + $0x8] sm:$0xf]
        %v171 = vld [vmem:[%s1] sm:$0xff]
        %v174 = vcombine.high %v169, %v169
        %176 = vrot.lane.b32.xlu0 %v169, 127
        %v177 = vpop.permute.xlu0 %176
        %178 = vrot.lane.b32.xlu0 %v174, 127
        %v179 = vpop.permute.xlu0 %178
        %180 = vrot.lane.b32.xlu0 %v170, 127
        %v181 = vpop.permute.xlu0 %180
        %v182 = vlaneseq
        %v183 = vand.u32 %v182, 127
        %vm184 = vcmp.lt.s32.totalorder %v183, 127
        %v185 = vsel %vm184, %v179, %v181
        %v186 = vsel %vm184, %v177, %v179
        %v187 = vsel %vm184, %v181, %v177
        %s188 = scalar_lea.vmem %s1, 8
        %v189 = vld [vmem:[%s188] sm:$0xff]
        %vm190 = vcmask 31744
        %v192 = vsel %vm190, %v189, 0
        %vm194 = vcmask 1043456
        %v196 = vsel %vm194, %v186, 0
        %v199 = vsel %vm194, %v185, 0
        %v202 = vsel %vm194, %v187, 0
        %204 = vmatprep.subr.mxu0 %v199
        %205 = vmatpush1.msra.mxu0 %v196
        %206 = vmatprep.subr.mxu0 0.0
        %207 = vmatpush1.msra.mxu0 0.0
        %208 = vmatprep.subr.mxu0 0.0
        %209 = vmatpush1.msra.mxu0 0.0
        %210 = vmatprep.subr.mxu0 0.0
        %211 = vmatpush1.msra.mxu0 0.0
        %212 = vmatprep.subr.mxu0 0.0
        %213 = vmatpush1.msra.mxu0 0.0
        %214 = vmatprep.subr.mxu0 0.0
        %215 = vmatpush1.msra.mxu0 0.0
        %216 = vmatprep.subr.mxu0 0.0
        %217 = vmatpush1.msra.mxu0 0.0
        %218 = vmatprep.subr.mxu0 0.0
        %219 = vmatpush1.msra.mxu0 0.0
        %220 = vmatprep.subr.mxu0 0.0
        %221 = vmatpush1.msra.mxu0 0.0
        %222 = vmatprep.subr.mxu0 0.0
        %223 = vmatpush1.msra.mxu0 0.0
        %224 = vmatprep.subr.mxu0 0.0
        %225 = vmatpush1.msra.mxu0 0.0
        %226 = vmatprep.subr.mxu0 0.0
        %227 = vmatpush1.msra.mxu0 0.0
        %228 = vmatprep.subr.mxu0 0.0
        %229 = vmatpush1.msra.mxu0 0.0
        %230 = vmatprep.subr.mxu0 0.0
        %231 = vmatpush1.msra.mxu0 0.0
        %232 = vmatprep.subr.mxu0 0.0
        %233 = vmatpush1.msra.mxu0 0.0
        %234 = vmatprep.subr.mxu0 0.0
        %235 = vmatpush1.msra.mxu0 0.0
        %236 = vmatprep.subr.mxu0 0.0
        %237 = vmatpush1.msra.mxu0 0.0
        %238 = vmatprep.subr.mxu0 0.0
        %239 = vmatpush1.msra.mxu0 0.0
        %240 = vmatprep.subr.mxu0 0.0
        %241 = vmatpush1.msra.mxu0 0.0
        %242 = vmatprep.subr.mxu0 0.0
        %243 = vmatpush1.msra.mxu0 0.0
        %244 = vmatprep.subr.mxu0 0.0
        %245 = vmatpush1.msra.mxu0 0.0
        %246 = vmatprep.subr.mxu0 0.0
        %247 = vmatpush1.msra.mxu0 0.0
        %248 = vmatprep.subr.mxu0 0.0
        %249 = vmatpush1.msra.mxu0 0.0
        %250 = vmatprep.subr.mxu0 0.0
        %251 = vmatpush1.msra.mxu0 0.0
        %252 = vmatprep.subr.mxu0 0.0
        %253 = vmatpush1.msra.mxu0 0.0
        %254 = vmatprep.subr.mxu0 0.0
        %255 = vmatpush1.msra.mxu0 0.0
        %256 = vmatprep.subr.mxu0 0.0
        %257 = vmatpush1.msra.mxu0 0.0
        %258 = vmatprep.subr.mxu0 0.0
        %259 = vmatpush1.msra.mxu0 0.0
        %260 = vmatprep.subr.mxu0 0.0
        %261 = vmatpush1.msra.mxu0 0.0
        %262 = vmatprep.subr.mxu0 0.0
        %263 = vmatpush1.msra.mxu0 0.0
        %264 = vmatprep.subr.mxu0 0.0
        %265 = vmatpush1.msra.mxu0 0.0
        %266 = vmatprep.subr.mxu0 0.0
        %267 = vmatpush1.msra.mxu0 0.0
        %268 = vmatprep.mubr.f32.mxu0 0.0
        %269 = vmatmul.mubr.f32.gmra.mrb[0].mxu0 %v192
        %v270 = vpop.f32.mrb[0].mxu0
        %v271 = vadd.f32 0.0, %v270
        %v272 = vpop.f32.mrb[0].mxu0
        %v273 = vadd.f32 0.0, %v272
        %274 = vdwg.mxu0
        %275 = vmatprep.subr.mxu0 0.0
        %276 = vmatpush1.msra.mxu0 %v202
        %277 = vmatprep.subr.mxu0 0.0
        %278 = vmatpush1.msra.mxu0 0.0
        %279 = vmatprep.subr.mxu0 0.0
        %280 = vmatpush1.msra.mxu0 0.0
        %281 = vmatprep.subr.mxu0 0.0
        %282 = vmatpush1.msra.mxu0 0.0
        %283 = vmatprep.subr.mxu0 0.0
        %284 = vmatpush1.msra.mxu0 0.0
        %285 = vmatprep.subr.mxu0 0.0
        %286 = vmatpush1.msra.mxu0 0.0
        %287 = vmatprep.subr.mxu0 0.0
        %288 = vmatpush1.msra.mxu0 0.0
        %289 = vmatprep.subr.mxu0 0.0
        %290 = vmatpush1.msra.mxu0 0.0
        %291 = vmatprep.subr.mxu0 0.0
        %292 = vmatpush1.msra.mxu0 0.0
        %293 = vmatprep.subr.mxu0 0.0
        %294 = vmatpush1.msra.mxu0 0.0
        %295 = vmatprep.subr.mxu0 0.0
        %296 = vmatpush1.msra.mxu0 0.0
        %297 = vmatprep.subr.mxu0 0.0
        %298 = vmatpush1.msra.mxu0 0.0
        %299 = vmatprep.subr.mxu0 0.0
        %300 = vmatpush1.msra.mxu0 0.0
        %301 = vmatprep.subr.mxu0 0.0
        %302 = vmatpush1.msra.mxu0 0.0
        %303 = vmatprep.subr.mxu0 0.0
        %304 = vmatpush1.msra.mxu0 0.0
        %305 = vmatprep.subr.mxu0 0.0
        %306 = vmatpush1.msra.mxu0 0.0
        %307 = vmatprep.subr.mxu0 0.0
        %308 = vmatpush1.msra.mxu0 0.0
        %309 = vmatprep.subr.mxu0 0.0
        %310 = vmatpush1.msra.mxu0 0.0
        %311 = vmatprep.subr.mxu0 0.0
        %312 = vmatpush1.msra.mxu0 0.0
        %313 = vmatprep.subr.mxu0 0.0
        %314 = vmatpush1.msra.mxu0 0.0
        %315 = vmatprep.subr.mxu0 0.0
        %316 = vmatpush1.msra.mxu0 0.0
        %317 = vmatprep.subr.mxu0 0.0
        %318 = vmatpush1.msra.mxu0 0.0
        %319 = vmatprep.subr.mxu0 0.0
        %320 = vmatpush1.msra.mxu0 0.0
        %321 = vmatprep.subr.mxu0 0.0
        %322 = vmatpush1.msra.mxu0 0.0
        %323 = vmatprep.subr.mxu0 0.0
        %324 = vmatpush1.msra.mxu0 0.0
        %325 = vmatprep.subr.mxu0 0.0
        %326 = vmatpush1.msra.mxu0 0.0
        %327 = vmatprep.subr.mxu0 0.0
        %328 = vmatpush1.msra.mxu0 0.0
        %329 = vmatprep.subr.mxu0 0.0
        %330 = vmatpush1.msra.mxu0 0.0
        %331 = vmatprep.subr.mxu0 0.0
        %332 = vmatpush1.msra.mxu0 0.0
        %333 = vmatprep.subr.mxu0 0.0
        %334 = vmatpush1.msra.mxu0 0.0
        %335 = vmatprep.subr.mxu0 0.0
        %336 = vmatpush1.msra.mxu0 0.0
        %337 = vmatprep.subr.mxu0 0.0
        %338 = vmatpush1.msra.mxu0 0.0
        %339 = vmatprep.mubr.f32.mxu0 0.0
        %340 = vmatmul.mubr.f32.gmra.mrb[0].mxu0 %v192
        %v341 = vpop.f32.mrb[0].mxu0
        %v342 = vadd.f32 0.0, %v341
        %v343 = vpop.f32.mrb[0].mxu0
        %344 = vdwg.mxu0
        %v346 = vsel %vm190, %v171, 0
        %v348 = vsel %vm194, %v169, 0
        %v350 = vsel %vm194, %v174, 0
        %v352 = vsel %vm194, %v170, 0
        %354 = vmatprep.subr.mxu0 %v350
        %355 = vmatpush1.msra.mxu0 %v348
        %356 = vmatprep.subr.mxu0 0.0
        %357 = vmatpush1.msra.mxu0 0.0
        %358 = vmatprep.subr.mxu0 0.0
        %359 = vmatpush1.msra.mxu0 0.0
        %360 = vmatprep.subr.mxu0 0.0
        %361 = vmatpush1.msra.mxu0 0.0
        %362 = vmatprep.subr.mxu0 0.0
        %363 = vmatpush1.msra.mxu0 0.0
        %364 = vmatprep.subr.mxu0 0.0
        %365 = vmatpush1.msra.mxu0 0.0
        %366 = vmatprep.subr.mxu0 0.0
        %367 = vmatpush1.msra.mxu0 0.0
        %368 = vmatprep.subr.mxu0 0.0
        %369 = vmatpush1.msra.mxu0 0.0
        %370 = vmatprep.subr.mxu0 0.0
        %371 = vmatpush1.msra.mxu0 0.0
        %372 = vmatprep.subr.mxu0 0.0
        %373 = vmatpush1.msra.mxu0 0.0
        %374 = vmatprep.subr.mxu0 0.0
        %375 = vmatpush1.msra.mxu0 0.0
        %376 = vmatprep.subr.mxu0 0.0
        %377 = vmatpush1.msra.mxu0 0.0
        %378 = vmatprep.subr.mxu0 0.0
        %379 = vmatpush1.msra.mxu0 0.0
        %380 = vmatprep.subr.mxu0 0.0
        %381 = vmatpush1.msra.mxu0 0.0
        %382 = vmatprep.subr.mxu0 0.0
        %383 = vmatpush1.msra.mxu0 0.0
        %384 = vmatprep.subr.mxu0 0.0
        %385 = vmatpush1.msra.mxu0 0.0
        %386 = vmatprep.subr.mxu0 0.0
        %387 = vmatpush1.msra.mxu0 0.0
        %388 = vmatprep.subr.mxu0 0.0
        %389 = vmatpush1.msra.mxu0 0.0
        %390 = vmatprep.subr.mxu0 0.0
        %391 = vmatpush1.msra.mxu0 0.0
        %392 = vmatprep.subr.mxu0 0.0
        %393 = vmatpush1.msra.mxu0 0.0
        %394 = vmatprep.subr.mxu0 0.0
        %395 = vmatpush1.msra.mxu0 0.0
        %396 = vmatprep.subr.mxu0 0.0
        %397 = vmatpush1.msra.mxu0 0.0
        %398 = vmatprep.subr.mxu0 0.0
        %399 = vmatpush1.msra.mxu0 0.0
        %400 = vmatprep.subr.mxu0 0.0
        %401 = vmatpush1.msra.mxu0 0.0
        %402 = vmatprep.subr.mxu0 0.0
        %403 = vmatpush1.msra.mxu0 0.0
        %404 = vmatprep.subr.mxu0 0.0
        %405 = vmatpush1.msra.mxu0 0.0
        %406 = vmatprep.subr.mxu0 0.0
        %407 = vmatpush1.msra.mxu0 0.0
        %408 = vmatprep.subr.mxu0 0.0
        %409 = vmatpush1.msra.mxu0 0.0
        %410 = vmatprep.subr.mxu0 0.0
        %411 = vmatpush1.msra.mxu0 0.0
        %412 = vmatprep.subr.mxu0 0.0
        %413 = vmatpush1.msra.mxu0 0.0
        %414 = vmatprep.subr.mxu0 0.0
        %415 = vmatpush1.msra.mxu0 0.0
        %416 = vmatprep.subr.mxu0 0.0
        %417 = vmatpush1.msra.mxu0 0.0
        %418 = vmatprep.mubr.f32.mxu0 0.0
        %419 = vmatmul.mubr.f32.gmra.mrb[0].mxu0 %v346
        %v420 = vpop.f32.mrb[0].mxu0
        %v421 = vadd.f32 %v271, %v420
        %v422 = vpop.f32.mrb[0].mxu0
        %v423 = vadd.f32 %v273, %v422
        %424 = vdwg.mxu0
        %425 = vmatprep.subr.mxu0 0.0
        %426 = vmatpush1.msra.mxu0 %v352
        %427 = vmatprep.subr.mxu0 0.0
        %428 = vmatpush1.msra.mxu0 0.0
        %429 = vmatprep.subr.mxu0 0.0
        %430 = vmatpush1.msra.mxu0 0.0
        %431 = vmatprep.subr.mxu0 0.0
        %432 = vmatpush1.msra.mxu0 0.0
        %433 = vmatprep.subr.mxu0 0.0
        %434 = vmatpush1.msra.mxu0 0.0
        %435 = vmatprep.subr.mxu0 0.0
        %436 = vmatpush1.msra.mxu0 0.0
        %437 = vmatprep.subr.mxu0 0.0
        %438 = vmatpush1.msra.mxu0 0.0
        %439 = vmatprep.subr.mxu0 0.0
        %440 = vmatpush1.msra.mxu0 0.0
        %441 = vmatprep.subr.mxu0 0.0
        %442 = vmatpush1.msra.mxu0 0.0
        %443 = vmatprep.subr.mxu0 0.0
        %444 = vmatpush1.msra.mxu0 0.0
        %445 = vmatprep.subr.mxu0 0.0
        %446 = vmatpush1.msra.mxu0 0.0
        %447 = vmatprep.subr.mxu0 0.0
        %448 = vmatpush1.msra.mxu0 0.0
        %449 = vmatprep.subr.mxu0 0.0
        %450 = vmatpush1.msra.mxu0 0.0
        %451 = vmatprep.subr.mxu0 0.0
        %452 = vmatpush1.msra.mxu0 0.0
        %453 = vmatprep.subr.mxu0 0.0
        %454 = vmatpush1.msra.mxu0 0.0
        %455 = vmatprep.subr.mxu0 0.0
        %456 = vmatpush1.msra.mxu0 0.0
        %457 = vmatprep.subr.mxu0 0.0
        %458 = vmatpush1.msra.mxu0 0.0
        %459 = vmatprep.subr.mxu0 0.0
        %460 = vmatpush1.msra.mxu0 0.0
        %461 = vmatprep.subr.mxu0 0.0
        %462 = vmatpush1.msra.mxu0 0.0
        %463 = vmatprep.subr.mxu0 0.0
        %464 = vmatpush1.msra.mxu0 0.0
        %465 = vmatprep.subr.mxu0 0.0
        %466 = vmatpush1.msra.mxu0 0.0
        %467 = vmatprep.subr.mxu0 0.0
        %468 = vmatpush1.msra.mxu0 0.0
        %469 = vmatprep.subr.mxu0 0.0
        %470 = vmatpush1.msra.mxu0 0.0
        %471 = vmatprep.subr.mxu0 0.0
        %472 = vmatpush1.msra.mxu0 0.0
        %473 = vmatprep.subr.mxu0 0.0
        %474 = vmatpush1.msra.mxu0 0.0
        %475 = vmatprep.subr.mxu0 0.0
        %476 = vmatpush1.msra.mxu0 0.0
        %477 = vmatprep.subr.mxu0 0.0
        %478 = vmatpush1.msra.mxu0 0.0
        %479 = vmatprep.subr.mxu0 0.0
        %480 = vmatpush1.msra.mxu0 0.0
        %481 = vmatprep.subr.mxu0 0.0
        %482 = vmatpush1.msra.mxu0 0.0
        %483 = vmatprep.subr.mxu0 0.0
        %484 = vmatpush1.msra.mxu0 0.0
        %485 = vmatprep.subr.mxu0 0.0
        %486 = vmatpush1.msra.mxu0 0.0
        %487 = vmatprep.subr.mxu0 0.0
        %488 = vmatpush1.msra.mxu0 0.0
        %489 = vmatprep.mubr.f32.mxu0 0.0
        %490 = vmatmul.mubr.f32.gmra.mrb[0].mxu0 %v346
        %v491 = vpop.f32.mrb[0].mxu0
        %v492 = vadd.f32 %v342, %v491
        %v493 = vpop.f32.mrb[0].mxu0
        %494 = vdwg.mxu0
        %495 = vrot.lane.b32.xlu0 %v169, 126
        %v496 = vpop.permute.xlu0 %495
        %497 = vrot.lane.b32.xlu0 %v174, 126
        %v498 = vpop.permute.xlu0 %497
        %499 = vrot.lane.b32.xlu0 %v170, 126
        %v500 = vpop.permute.xlu0 %499
        %vm501 = vcmp.lt.s32.totalorder %v183, 126
        %v502 = vsel %vm501, %v498, %v500
        %v503 = vsel %vm501, %v496, %v498
        %v504 = vsel %vm501, %v500, %v496
        %s505 = scalar_lea.vmem %s1, 16
        %v506 = vld [vmem:[%s505] sm:$0xff]
        %v508 = vsel %vm190, %v506, 0
        %v511 = vsel %vm194, %v503, 0
        %v514 = vsel %vm194, %v502, 0
        %v517 = vsel %vm194, %v504, 0
        %519 = vmatprep.subr.mxu0 %v514
        %520 = vmatpush1.msra.mxu0 %v511
        %521 = vmatprep.subr.mxu0 0.0
        %522 = vmatpush1.msra.mxu0 0.0
        %523 = vmatprep.subr.mxu0 0.0
        %524 = vmatpush1.msra.mxu0 0.0
        %525 = vmatprep.subr.mxu0 0.0
        %526 = vmatpush1.msra.mxu0 0.0
        %527 = vmatprep.subr.mxu0 0.0
        %528 = vmatpush1.msra.mxu0 0.0
        %529 = vmatprep.subr.mxu0 0.0
        %530 = vmatpush1.msra.mxu0 0.0
        %531 = vmatprep.subr.mxu0 0.0
        %532 = vmatpush1.msra.mxu0 0.0
        %533 = vmatprep.subr.mxu0 0.0
        %534 = vmatpush1.msra.mxu0 0.0
        %535 = vmatprep.subr.mxu0 0.0
        %536 = vmatpush1.msra.mxu0 0.0
        %537 = vmatprep.subr.mxu0 0.0
        %538 = vmatpush1.msra.mxu0 0.0
        %539 = vmatprep.subr.mxu0 0.0
        %540 = vmatpush1.msra.mxu0 0.0
        %541 = vmatprep.subr.mxu0 0.0
        %542 = vmatpush1.msra.mxu0 0.0
        %543 = vmatprep.subr.mxu0 0.0
        %544 = vmatpush1.msra.mxu0 0.0
        %545 = vmatprep.subr.mxu0 0.0
        %546 = vmatpush1.msra.mxu0 0.0
        %547 = vmatprep.subr.mxu0 0.0
        %548 = vmatpush1.msra.mxu0 0.0
        %549 = vmatprep.subr.mxu0 0.0
        %550 = vmatpush1.msra.mxu0 0.0
        %551 = vmatprep.subr.mxu0 0.0
        %552 = vmatpush1.msra.mxu0 0.0
        %553 = vmatprep.subr.mxu0 0.0
        %554 = vmatpush1.msra.mxu0 0.0
        %555 = vmatprep.subr.mxu0 0.0
        %556 = vmatpush1.msra.mxu0 0.0
        %557 = vmatprep.subr.mxu0 0.0
        %558 = vmatpush1.msra.mxu0 0.0
        %559 = vmatprep.subr.mxu0 0.0
        %560 = vmatpush1.msra.mxu0 0.0
        %561 = vmatprep.subr.mxu0 0.0
        %562 = vmatpush1.msra.mxu0 0.0
        %563 = vmatprep.subr.mxu0 0.0
        %564 = vmatpush1.msra.mxu0 0.0
        %565 = vmatprep.subr.mxu0 0.0
        %566 = vmatpush1.msra.mxu0 0.0
        %567 = vmatprep.subr.mxu0 0.0
        %568 = vmatpush1.msra.mxu0 0.0
        %569 = vmatprep.subr.mxu0 0.0
        %570 = vmatpush1.msra.mxu0 0.0
        %571 = vmatprep.subr.mxu0 0.0
        %572 = vmatpush1.msra.mxu0 0.0
        %573 = vmatprep.subr.mxu0 0.0
        %574 = vmatpush1.msra.mxu0 0.0
        %575 = vmatprep.subr.mxu0 0.0
        %576 = vmatpush1.msra.mxu0 0.0
        %577 = vmatprep.subr.mxu0 0.0
        %578 = vmatpush1.msra.mxu0 0.0
        %579 = vmatprep.subr.mxu0 0.0
        %580 = vmatpush1.msra.mxu0 0.0
        %581 = vmatprep.subr.mxu0 0.0
        %582 = vmatpush1.msra.mxu0 0.0
        %583 = vmatprep.mubr.f32.mxu0 0.0
        %584 = vmatmul.mubr.f32.gmra.mrb[0].mxu0 %v508
        %v585 = vpop.f32.mrb[0].mxu0
        %v586 = vadd.f32 0.0, %v585
        %v587 = vpop.f32.mrb[0].mxu0
        %v588 = vadd.f32 0.0, %v587
        %589 = vdwg.mxu0
        %590 = vmatprep.subr.mxu0 0.0
        %591 = vmatpush1.msra.mxu0 %v517
        %592 = vmatprep.subr.mxu0 0.0
        %593 = vmatpush1.msra.mxu0 0.0
        %594 = vmatprep.subr.mxu0 0.0
        %595 = vmatpush1.msra.mxu0 0.0
        %596 = vmatprep.subr.mxu0 0.0
        %597 = vmatpush1.msra.mxu0 0.0
        %598 = vmatprep.subr.mxu0 0.0
        %599 = vmatpush1.msra.mxu0 0.0
        %600 = vmatprep.subr.mxu0 0.0
        %601 = vmatpush1.msra.mxu0 0.0
        %602 = vmatprep.subr.mxu0 0.0
        %603 = vmatpush1.msra.mxu0 0.0
        %604 = vmatprep.subr.mxu0 0.0
        %605 = vmatpush1.msra.mxu0 0.0
        %606 = vmatprep.subr.mxu0 0.0
        %607 = vmatpush1.msra.mxu0 0.0
        %608 = vmatprep.subr.mxu0 0.0
        %609 = vmatpush1.msra.mxu0 0.0
        %610 = vmatprep.subr.mxu0 0.0
        %611 = vmatpush1.msra.mxu0 0.0
        %612 = vmatprep.subr.mxu0 0.0
        %613 = vmatpush1.msra.mxu0 0.0
        %614 = vmatprep.subr.mxu0 0.0
        %615 = vmatpush1.msra.mxu0 0.0
        %616 = vmatprep.subr.mxu0 0.0
        %617 = vmatpush1.msra.mxu0 0.0
        %618 = vmatprep.subr.mxu0 0.0
        %619 = vmatpush1.msra.mxu0 0.0
        %620 = vmatprep.subr.mxu0 0.0
        %621 = vmatpush1.msra.mxu0 0.0
        %622 = vmatprep.subr.mxu0 0.0
        %623 = vmatpush1.msra.mxu0 0.0
        %624 = vmatprep.subr.mxu0 0.0
        %625 = vmatpush1.msra.mxu0 0.0
        %626 = vmatprep.subr.mxu0 0.0
        %627 = vmatpush1.msra.mxu0 0.0
        %628 = vmatprep.subr.mxu0 0.0
        %629 = vmatpush1.msra.mxu0 0.0
        %630 = vmatprep.subr.mxu0 0.0
        %631 = vmatpush1.msra.mxu0 0.0
        %632 = vmatprep.subr.mxu0 0.0
        %633 = vmatpush1.msra.mxu0 0.0
        %634 = vmatprep.subr.mxu0 0.0
        %635 = vmatpush1.msra.mxu0 0.0
        %636 = vmatprep.subr.mxu0 0.0
        %637 = vmatpush1.msra.mxu0 0.0
        %638 = vmatprep.subr.mxu0 0.0
        %639 = vmatpush1.msra.mxu0 0.0
        %640 = vmatprep.subr.mxu0 0.0
        %641 = vmatpush1.msra.mxu0 0.0
        %642 = vmatprep.subr.mxu0 0.0
        %643 = vmatpush1.msra.mxu0 0.0
        %644 = vmatprep.subr.mxu0 0.0
        %645 = vmatpush1.msra.mxu0 0.0
        %646 = vmatprep.subr.mxu0 0.0
        %647 = vmatpush1.msra.mxu0 0.0
        %648 = vmatprep.subr.mxu0 0.0
        %649 = vmatpush1.msra.mxu0 0.0
        %650 = vmatprep.subr.mxu0 0.0
        %651 = vmatpush1.msra.mxu0 0.0
        %652 = vmatprep.subr.mxu0 0.0
        %653 = vmatpush1.msra.mxu0 0.0
        %654 = vmatprep.mubr.f32.mxu0 0.0
        %655 = vmatmul.mubr.f32.gmra.mrb[0].mxu0 %v508
        %v656 = vpop.f32.mrb[0].mxu0
        %v657 = vadd.f32 0.0, %v656
        %v658 = vpop.f32.mrb[0].mxu0
        %659 = vdwg.mxu0
        %v660 = vadd.f32 %v421, %v586
        %v661 = vadd.f32 %v423, %v588
        %v662 = vadd.f32 %v492, %v657
        %663 = vrot.lane.b32.xlu0 %v169, 110
        %v664 = vpop.permute.xlu0 %663
        %665 = vrot.lane.b32.xlu0 %v174, 110
        %v666 = vpop.permute.xlu0 %665
        %667 = vrot.lane.b32.xlu0 %v170, 110
        %v668 = vpop.permute.xlu0 %667
        %vm669 = vcmp.lt.s32.totalorder %v183, 110
        %v670 = vsel %vm669, %v666, %v668
        %v671 = vsel %vm669, %v664, %v666
        %v672 = vsel %vm669, %v668, %v664
        %s673 = scalar_lea.vmem %s1, 24
        %v674 = vld [vmem:[%s673] sm:$0xff]
        %v676 = vsel %vm190, %v674, 0
        %v679 = vsel %vm194, %v671, 0
        %v682 = vsel %vm194, %v670, 0
        %v685 = vsel %vm194, %v672, 0
        %687 = vmatprep.subr.mxu0 %v682
        %688 = vmatpush1.msra.mxu0 %v679
        %689 = vmatprep.subr.mxu0 0.0
        %690 = vmatpush1.msra.mxu0 0.0
        %691 = vmatprep.subr.mxu0 0.0
        %692 = vmatpush1.msra.mxu0 0.0
        %693 = vmatprep.subr.mxu0 0.0
        %694 = vmatpush1.msra.mxu0 0.0
        %695 = vmatprep.subr.mxu0 0.0
        %696 = vmatpush1.msra.mxu0 0.0
        %697 = vmatprep.subr.mxu0 0.0
        %698 = vmatpush1.msra.mxu0 0.0
        %699 = vmatprep.subr.mxu0 0.0
        %700 = vmatpush1.msra.mxu0 0.0
        %701 = vmatprep.subr.mxu0 0.0
        %702 = vmatpush1.msra.mxu0 0.0
        %703 = vmatprep.subr.mxu0 0.0
        %704 = vmatpush1.msra.mxu0 0.0
        %705 = vmatprep.subr.mxu0 0.0
        %706 = vmatpush1.msra.mxu0 0.0
        %707 = vmatprep.subr.mxu0 0.0
        %708 = vmatpush1.msra.mxu0 0.0
        %709 = vmatprep.subr.mxu0 0.0
        %710 = vmatpush1.msra.mxu0 0.0
        %711 = vmatprep.subr.mxu0 0.0
        %712 = vmatpush1.msra.mxu0 0.0
        %713 = vmatprep.subr.mxu0 0.0
        %714 = vmatpush1.msra.mxu0 0.0
        %715 = vmatprep.subr.mxu0 0.0
        %716 = vmatpush1.msra.mxu0 0.0
        %717 = vmatprep.subr.mxu0 0.0
        %718 = vmatpush1.msra.mxu0 0.0
        %719 = vmatprep.subr.mxu0 0.0
        %720 = vmatpush1.msra.mxu0 0.0
        %721 = vmatprep.subr.mxu0 0.0
        %722 = vmatpush1.msra.mxu0 0.0
        %723 = vmatprep.subr.mxu0 0.0
        %724 = vmatpush1.msra.mxu0 0.0
        %725 = vmatprep.subr.mxu0 0.0
        %726 = vmatpush1.msra.mxu0 0.0
        %727 = vmatprep.subr.mxu0 0.0
        %728 = vmatpush1.msra.mxu0 0.0
        %729 = vmatprep.subr.mxu0 0.0
        %730 = vmatpush1.msra.mxu0 0.0
        %731 = vmatprep.subr.mxu0 0.0
        %732 = vmatpush1.msra.mxu0 0.0
        %733 = vmatprep.subr.mxu0 0.0
        %734 = vmatpush1.msra.mxu0 0.0
        %735 = vmatprep.subr.mxu0 0.0
        %736 = vmatpush1.msra.mxu0 0.0
        %737 = vmatprep.subr.mxu0 0.0
        %738 = vmatpush1.msra.mxu0 0.0
        %739 = vmatprep.subr.mxu0 0.0
        %740 = vmatpush1.msra.mxu0 0.0
        %741 = vmatprep.subr.mxu0 0.0
        %742 = vmatpush1.msra.mxu0 0.0
        %743 = vmatprep.subr.mxu0 0.0
        %744 = vmatpush1.msra.mxu0 0.0
        %745 = vmatprep.subr.mxu0 0.0
        %746 = vmatpush1.msra.mxu0 0.0
        %747 = vmatprep.subr.mxu0 0.0
        %748 = vmatpush1.msra.mxu0 0.0
        %749 = vmatprep.subr.mxu0 0.0
        %750 = vmatpush1.msra.mxu0 0.0
        %751 = vmatprep.mubr.f32.mxu0 0.0
        %752 = vmatmul.mubr.f32.gmra.mrb[0].mxu0 %v676
        %v753 = vpop.f32.mrb[0].mxu0
        %v754 = vadd.f32 0.0, %v753
        %v755 = vpop.f32.mrb[0].mxu0
        %v756 = vadd.f32 0.0, %v755
        %757 = vdwg.mxu0
        %758 = vmatprep.subr.mxu0 0.0
        %759 = vmatpush1.msra.mxu0 %v685
        %760 = vmatprep.subr.mxu0 0.0
        %761 = vmatpush1.msra.mxu0 0.0
        %762 = vmatprep.subr.mxu0 0.0
        %763 = vmatpush1.msra.mxu0 0.0
        %764 = vmatprep.subr.mxu0 0.0
        %765 = vmatpush1.msra.mxu0 0.0
        %766 = vmatprep.subr.mxu0 0.0
        %767 = vmatpush1.msra.mxu0 0.0
        %768 = vmatprep.subr.mxu0 0.0
        %769 = vmatpush1.msra.mxu0 0.0
        %770 = vmatprep.subr.mxu0 0.0
        %771 = vmatpush1.msra.mxu0 0.0
        %772 = vmatprep.subr.mxu0 0.0
        %773 = vmatpush1.msra.mxu0 0.0
        %774 = vmatprep.subr.mxu0 0.0
        %775 = vmatpush1.msra.mxu0 0.0
        %776 = vmatprep.subr.mxu0 0.0
        %777 = vmatpush1.msra.mxu0 0.0
        %778 = vmatprep.subr.mxu0 0.0
        %779 = vmatpush1.msra.mxu0 0.0
        %780 = vmatprep.subr.mxu0 0.0
        %781 = vmatpush1.msra.mxu0 0.0
        %782 = vmatprep.subr.mxu0 0.0
        %783 = vmatpush1.msra.mxu0 0.0
        %784 = vmatprep.subr.mxu0 0.0
        %785 = vmatpush1.msra.mxu0 0.0
        %786 = vmatprep.subr.mxu0 0.0
        %787 = vmatpush1.msra.mxu0 0.0
        %788 = vmatprep.subr.mxu0 0.0
        %789 = vmatpush1.msra.mxu0 0.0
        %790 = vmatprep.subr.mxu0 0.0
        %791 = vmatpush1.msra.mxu0 0.0
        %792 = vmatprep.subr.mxu0 0.0
        %793 = vmatpush1.msra.mxu0 0.0
        %794 = vmatprep.subr.mxu0 0.0
        %795 = vmatpush1.msra.mxu0 0.0
        %796 = vmatprep.subr.mxu0 0.0
        %797 = vmatpush1.msra.mxu0 0.0
        %798 = vmatprep.subr.mxu0 0.0
        %799 = vmatpush1.msra.mxu0 0.0
        %800 = vmatprep.subr.mxu0 0.0
        %801 = vmatpush1.msra.mxu0 0.0
        %802 = vmatprep.subr.mxu0 0.0
        %803 = vmatpush1.msra.mxu0 0.0
        %804 = vmatprep.subr.mxu0 0.0
        %805 = vmatpush1.msra.mxu0 0.0
        %806 = vmatprep.subr.mxu0 0.0
        %807 = vmatpush1.msra.mxu0 0.0
        %808 = vmatprep.subr.mxu0 0.0
        %809 = vmatpush1.msra.mxu0 0.0
        %810 = vmatprep.subr.mxu0 0.0
        %811 = vmatpush1.msra.mxu0 0.0
        %812 = vmatprep.subr.mxu0 0.0
        %813 = vmatpush1.msra.mxu0 0.0
        %814 = vmatprep.subr.mxu0 0.0
        %815 = vmatpush1.msra.mxu0 0.0
        %816 = vmatprep.subr.mxu0 0.0
        %817 = vmatpush1.msra.mxu0 0.0
        %818 = vmatprep.subr.mxu0 0.0
        %819 = vmatpush1.msra.mxu0 0.0
        %820 = vmatprep.subr.mxu0 0.0
        %821 = vmatpush1.msra.mxu0 0.0
        %822 = vmatprep.mubr.f32.mxu0 0.0
        %823 = vmatmul.mubr.f32.gmra.mrb[0].mxu0 %v676
        %v824 = vpop.f32.mrb[0].mxu0
        %v825 = vadd.f32 0.0, %v824
        %v826 = vpop.f32.mrb[0].mxu0
        %827 = vdwg.mxu0
        %v828 = vadd.f32 %v660, %v754
        %v829 = vadd.f32 %v661, %v756
        %v830 = vadd.f32 %v662, %v825
        %831 = vrot.lane.b32.xlu0 %v169, 109
        %v832 = vpop.permute.xlu0 %831
        %833 = vrot.lane.b32.xlu0 %v174, 109
        %v834 = vpop.permute.xlu0 %833
        %835 = vrot.lane.b32.xlu0 %v170, 109
        %v836 = vpop.permute.xlu0 %835
        %vm837 = vcmp.lt.s32.totalorder %v183, 109
        %v838 = vsel %vm837, %v834, %v836
        %v839 = vsel %vm837, %v832, %v834
        %v840 = vsel %vm837, %v836, %v832
        %s841 = scalar_lea.vmem %s1, 32
        %v842 = vld [vmem:[%s841] sm:$0xff]
        %v844 = vsel %vm190, %v842, 0
        %v847 = vsel %vm194, %v839, 0
        %v850 = vsel %vm194, %v838, 0
        %v853 = vsel %vm194, %v840, 0
        %855 = vmatprep.subr.mxu0 %v850
        %856 = vmatpush1.msra.mxu0 %v847
        %857 = vmatprep.subr.mxu0 0.0
        %858 = vmatpush1.msra.mxu0 0.0
        %859 = vmatprep.subr.mxu0 0.0
        %860 = vmatpush1.msra.mxu0 0.0
        %861 = vmatprep.subr.mxu0 0.0
        %862 = vmatpush1.msra.mxu0 0.0
        %863 = vmatprep.subr.mxu0 0.0
        %864 = vmatpush1.msra.mxu0 0.0
        %865 = vmatprep.subr.mxu0 0.0
        %866 = vmatpush1.msra.mxu0 0.0
        %867 = vmatprep.subr.mxu0 0.0
        %868 = vmatpush1.msra.mxu0 0.0
        %869 = vmatprep.subr.mxu0 0.0
        %870 = vmatpush1.msra.mxu0 0.0
        %871 = vmatprep.subr.mxu0 0.0
        %872 = vmatpush1.msra.mxu0 0.0
        %873 = vmatprep.subr.mxu0 0.0
        %874 = vmatpush1.msra.mxu0 0.0
        %875 = vmatprep.subr.mxu0 0.0
        %876 = vmatpush1.msra.mxu0 0.0
        %877 = vmatprep.subr.mxu0 0.0
        %878 = vmatpush1.msra.mxu0 0.0
        %879 = vmatprep.subr.mxu0 0.0
        %880 = vmatpush1.msra.mxu0 0.0
        %881 = vmatprep.subr.mxu0 0.0
        %882 = vmatpush1.msra.mxu0 0.0
        %883 = vmatprep.subr.mxu0 0.0
        %884 = vmatpush1.msra.mxu0 0.0
        %885 = vmatprep.subr.mxu0 0.0
        %886 = vmatpush1.msra.mxu0 0.0
        %887 = vmatprep.subr.mxu0 0.0
        %888 = vmatpush1.msra.mxu0 0.0
        %889 = vmatprep.subr.mxu0 0.0
        %890 = vmatpush1.msra.mxu0 0.0
        %891 = vmatprep.subr.mxu0 0.0
        %892 = vmatpush1.msra.mxu0 0.0
        %893 = vmatprep.subr.mxu0 0.0
        %894 = vmatpush1.msra.mxu0 0.0
        %895 = vmatprep.subr.mxu0 0.0
        %896 = vmatpush1.msra.mxu0 0.0
        %897 = vmatprep.subr.mxu0 0.0
        %898 = vmatpush1.msra.mxu0 0.0
        %899 = vmatprep.subr.mxu0 0.0
        %900 = vmatpush1.msra.mxu0 0.0
        %901 = vmatprep.subr.mxu0 0.0
        %902 = vmatpush1.msra.mxu0 0.0
        %903 = vmatprep.subr.mxu0 0.0
        %904 = vmatpush1.msra.mxu0 0.0
        %905 = vmatprep.subr.mxu0 0.0
        %906 = vmatpush1.msra.mxu0 0.0
        %907 = vmatprep.subr.mxu0 0.0
        %908 = vmatpush1.msra.mxu0 0.0
        %909 = vmatprep.subr.mxu0 0.0
        %910 = vmatpush1.msra.mxu0 0.0
        %911 = vmatprep.subr.mxu0 0.0
        %912 = vmatpush1.msra.mxu0 0.0
        %913 = vmatprep.subr.mxu0 0.0
        %914 = vmatpush1.msra.mxu0 0.0
        %915 = vmatprep.subr.mxu0 0.0
        %916 = vmatpush1.msra.mxu0 0.0
        %917 = vmatprep.subr.mxu0 0.0
        %918 = vmatpush1.msra.mxu0 0.0
        %919 = vmatprep.mubr.f32.mxu0 0.0
        %920 = vmatmul.mubr.f32.gmra.mrb[0].mxu0 %v844
        %v921 = vpop.f32.mrb[0].mxu0
        %v922 = vadd.f32 0.0, %v921
        %v923 = vpop.f32.mrb[0].mxu0
        %v924 = vadd.f32 0.0, %v923
        %925 = vdwg.mxu0
        %926 = vmatprep.subr.mxu0 0.0
        %927 = vmatpush1.msra.mxu0 %v853
        %928 = vmatprep.subr.mxu0 0.0
        %929 = vmatpush1.msra.mxu0 0.0
        %930 = vmatprep.subr.mxu0 0.0
        %931 = vmatpush1.msra.mxu0 0.0
        %932 = vmatprep.subr.mxu0 0.0
        %933 = vmatpush1.msra.mxu0 0.0
        %934 = vmatprep.subr.mxu0 0.0
        %935 = vmatpush1.msra.mxu0 0.0
        %936 = vmatprep.subr.mxu0 0.0
        %937 = vmatpush1.msra.mxu0 0.0
        %938 = vmatprep.subr.mxu0 0.0
        %939 = vmatpush1.msra.mxu0 0.0
        %940 = vmatprep.subr.mxu0 0.0
        %941 = vmatpush1.msra.mxu0 0.0
        %942 = vmatprep.subr.mxu0 0.0
        %943 = vmatpush1.msra.mxu0 0.0
        %944 = vmatprep.subr.mxu0 0.0
        %945 = vmatpush1.msra.mxu0 0.0
        %946 = vmatprep.subr.mxu0 0.0
        %947 = vmatpush1.msra.mxu0 0.0
        %948 = vmatprep.subr.mxu0 0.0
        %949 = vmatpush1.msra.mxu0 0.0
        %950 = vmatprep.subr.mxu0 0.0
        %951 = vmatpush1.msra.mxu0 0.0
        %952 = vmatprep.subr.mxu0 0.0
        %953 = vmatpush1.msra.mxu0 0.0
        %954 = vmatprep.subr.mxu0 0.0
        %955 = vmatpush1.msra.mxu0 0.0
        %956 = vmatprep.subr.mxu0 0.0
        %957 = vmatpush1.msra.mxu0 0.0
        %958 = vmatprep.subr.mxu0 0.0
        %959 = vmatpush1.msra.mxu0 0.0
        %960 = vmatprep.subr.mxu0 0.0
        %961 = vmatpush1.msra.mxu0 0.0
        %962 = vmatprep.subr.mxu0 0.0
        %963 = vmatpush1.msra.mxu0 0.0
        %964 = vmatprep.subr.mxu0 0.0
        %965 = vmatpush1.msra.mxu0 0.0
        %966 = vmatprep.subr.mxu0 0.0
        %967 = vmatpush1.msra.mxu0 0.0
        %968 = vmatprep.subr.mxu0 0.0
        %969 = vmatpush1.msra.mxu0 0.0
        %970 = vmatprep.subr.mxu0 0.0
        %971 = vmatpush1.msra.mxu0 0.0
        %972 = vmatprep.subr.mxu0 0.0
        %973 = vmatpush1.msra.mxu0 0.0
        %974 = vmatprep.subr.mxu0 0.0
        %975 = vmatpush1.msra.mxu0 0.0
        %976 = vmatprep.subr.mxu0 0.0
        %977 = vmatpush1.msra.mxu0 0.0
        %978 = vmatprep.subr.mxu0 0.0
        %979 = vmatpush1.msra.mxu0 0.0
        %980 = vmatprep.subr.mxu0 0.0
        %981 = vmatpush1.msra.mxu0 0.0
        %982 = vmatprep.subr.mxu0 0.0
        %983 = vmatpush1.msra.mxu0 0.0
        %984 = vmatprep.subr.mxu0 0.0
        %985 = vmatpush1.msra.mxu0 0.0
        %986 = vmatprep.subr.mxu0 0.0
        %987 = vmatpush1.msra.mxu0 0.0
        %988 = vmatprep.subr.mxu0 0.0
        %989 = vmatpush1.msra.mxu0 0.0
        %990 = vmatprep.mubr.f32.mxu0 0.0
        %991 = vmatmul.mubr.f32.gmra.mrb[0].mxu0 %v844
        %v992 = vpop.f32.mrb[0].mxu0
        %v993 = vadd.f32 0.0, %v992
        %v994 = vpop.f32.mrb[0].mxu0
        %995 = vdwg.mxu0
        %v996 = vadd.f32 %v828, %v922
        %v997 = vadd.f32 %v829, %v924
        %v998 = vadd.f32 %v830, %v993
        %999 = vrot.lane.b32.xlu0 %v169, 108
        %v1000 = vpop.permute.xlu0 %999
        %1001 = vrot.lane.b32.xlu0 %v174, 108
        %v1002 = vpop.permute.xlu0 %1001
        %1003 = vrot.lane.b32.xlu0 %v170, 108
        %v1004 = vpop.permute.xlu0 %1003
        %vm1005 = vcmp.lt.s32.totalorder %v183, 108
        %v1006 = vsel %vm1005, %v1002, %v1004
        %v1007 = vsel %vm1005, %v1000, %v1002
        %v1008 = vsel %vm1005, %v1004, %v1000
        %s1009 = scalar_lea.vmem %s1, 40
        %v1010 = vld [vmem:[%s1009] sm:$0xff]
        %v1012 = vsel %vm190, %v1010, 0
        %v1015 = vsel %vm194, %v1007, 0
        %v1018 = vsel %vm194, %v1006, 0
        %v1021 = vsel %vm194, %v1008, 0
        %1023 = vmatprep.subr.mxu0 %v1018
        %1024 = vmatpush1.msra.mxu0 %v1015
        %1025 = vmatprep.subr.mxu0 0.0
        %1026 = vmatpush1.msra.mxu0 0.0
        %1027 = vmatprep.subr.mxu0 0.0
        %1028 = vmatpush1.msra.mxu0 0.0
        %1029 = vmatprep.subr.mxu0 0.0
        %1030 = vmatpush1.msra.mxu0 0.0
        %1031 = vmatprep.subr.mxu0 0.0
        %1032 = vmatpush1.msra.mxu0 0.0
        %1033 = vmatprep.subr.mxu0 0.0
        %1034 = vmatpush1.msra.mxu0 0.0
        %1035 = vmatprep.subr.mxu0 0.0
        %1036 = vmatpush1.msra.mxu0 0.0
        %1037 = vmatprep.subr.mxu0 0.0
        %1038 = vmatpush1.msra.mxu0 0.0
        %1039 = vmatprep.subr.mxu0 0.0
        %1040 = vmatpush1.msra.mxu0 0.0
        %1041 = vmatprep.subr.mxu0 0.0
        %1042 = vmatpush1.msra.mxu0 0.0
        %1043 = vmatprep.subr.mxu0 0.0
        %1044 = vmatpush1.msra.mxu0 0.0
        %1045 = vmatprep.subr.mxu0 0.0
        %1046 = vmatpush1.msra.mxu0 0.0
        %1047 = vmatprep.subr.mxu0 0.0
        %1048 = vmatpush1.msra.mxu0 0.0
        %1049 = vmatprep.subr.mxu0 0.0
        %1050 = vmatpush1.msra.mxu0 0.0
        %1051 = vmatprep.subr.mxu0 0.0
        %1052 = vmatpush1.msra.mxu0 0.0
        %1053 = vmatprep.subr.mxu0 0.0
        %1054 = vmatpush1.msra.mxu0 0.0
        %1055 = vmatprep.subr.mxu0 0.0
        %1056 = vmatpush1.msra.mxu0 0.0
        %1057 = vmatprep.subr.mxu0 0.0
        %1058 = vmatpush1.msra.mxu0 0.0
        %1059 = vmatprep.subr.mxu0 0.0
        %1060 = vmatpush1.msra.mxu0 0.0
        %1061 = vmatprep.subr.mxu0 0.0
        %1062 = vmatpush1.msra.mxu0 0.0
        %1063 = vmatprep.subr.mxu0 0.0
        %1064 = vmatpush1.msra.mxu0 0.0
        %1065 = vmatprep.subr.mxu0 0.0
        %1066 = vmatpush1.msra.mxu0 0.0
        %1067 = vmatprep.subr.mxu0 0.0
        %1068 = vmatpush1.msra.mxu0 0.0
        %1069 = vmatprep.subr.mxu0 0.0
        %1070 = vmatpush1.msra.mxu0 0.0
        %1071 = vmatprep.subr.mxu0 0.0
        %1072 = vmatpush1.msra.mxu0 0.0
        %1073 = vmatprep.subr.mxu0 0.0
        %1074 = vmatpush1.msra.mxu0 0.0
        %1075 = vmatprep.subr.mxu0 0.0
        %1076 = vmatpush1.msra.mxu0 0.0
        %1077 = vmatprep.subr.mxu0 0.0
        %1078 = vmatpush1.msra.mxu0 0.0
        %1079 = vmatprep.subr.mxu0 0.0
        %1080 = vmatpush1.msra.mxu0 0.0
        %1081 = vmatprep.subr.mxu0 0.0
        %1082 = vmatpush1.msra.mxu0 0.0
        %1083 = vmatprep.subr.mxu0 0.0
        %1084 = vmatpush1.msra.mxu0 0.0
        %1085 = vmatprep.subr.mxu0 0.0
        %1086 = vmatpush1.msra.mxu0 0.0
        %1087 = vmatprep.mubr.f32.mxu0 0.0
        %1088 = vmatmul.mubr.f32.gmra.mrb[0].mxu0 %v1012
        %v1089 = vpop.f32.mrb[0].mxu0
        %v1090 = vadd.f32 0.0, %v1089
        %v1091 = vpop.f32.mrb[0].mxu0
        %v1092 = vadd.f32 0.0, %v1091
        %1093 = vdwg.mxu0
        %1094 = vmatprep.subr.mxu0 0.0
        %1095 = vmatpush1.msra.mxu0 %v1021
        %1096 = vmatprep.subr.mxu0 0.0
        %1097 = vmatpush1.msra.mxu0 0.0
        %1098 = vmatprep.subr.mxu0 0.0
        %1099 = vmatpush1.msra.mxu0 0.0
        %1100 = vmatprep.subr.mxu0 0.0
        %1101 = vmatpush1.msra.mxu0 0.0
        %1102 = vmatprep.subr.mxu0 0.0
        %1103 = vmatpush1.msra.mxu0 0.0
        %1104 = vmatprep.subr.mxu0 0.0
        %1105 = vmatpush1.msra.mxu0 0.0
        %1106 = vmatprep.subr.mxu0 0.0
        %1107 = vmatpush1.msra.mxu0 0.0
        %1108 = vmatprep.subr.mxu0 0.0
        %1109 = vmatpush1.msra.mxu0 0.0
        %1110 = vmatprep.subr.mxu0 0.0
        %1111 = vmatpush1.msra.mxu0 0.0
        %1112 = vmatprep.subr.mxu0 0.0
        %1113 = vmatpush1.msra.mxu0 0.0
        %1114 = vmatprep.subr.mxu0 0.0
        %1115 = vmatpush1.msra.mxu0 0.0
        %1116 = vmatprep.subr.mxu0 0.0
        %1117 = vmatpush1.msra.mxu0 0.0
        %1118 = vmatprep.subr.mxu0 0.0
        %1119 = vmatpush1.msra.mxu0 0.0
        %1120 = vmatprep.subr.mxu0 0.0
        %1121 = vmatpush1.msra.mxu0 0.0
        %1122 = vmatprep.subr.mxu0 0.0
        %1123 = vmatpush1.msra.mxu0 0.0
        %1124 = vmatprep.subr.mxu0 0.0
        %1125 = vmatpush1.msra.mxu0 0.0
        %1126 = vmatprep.subr.mxu0 0.0
        %1127 = vmatpush1.msra.mxu0 0.0
        %1128 = vmatprep.subr.mxu0 0.0
        %1129 = vmatpush1.msra.mxu0 0.0
        %1130 = vmatprep.subr.mxu0 0.0
        %1131 = vmatpush1.msra.mxu0 0.0
        %1132 = vmatprep.subr.mxu0 0.0
        %1133 = vmatpush1.msra.mxu0 0.0
        %1134 = vmatprep.subr.mxu0 0.0
        %1135 = vmatpush1.msra.mxu0 0.0
        %1136 = vmatprep.subr.mxu0 0.0
        %1137 = vmatpush1.msra.mxu0 0.0
        %1138 = vmatprep.subr.mxu0 0.0
        %1139 = vmatpush1.msra.mxu0 0.0
        %1140 = vmatprep.subr.mxu0 0.0
        %1141 = vmatpush1.msra.mxu0 0.0
        %1142 = vmatprep.subr.mxu0 0.0
        %1143 = vmatpush1.msra.mxu0 0.0
        %1144 = vmatprep.subr.mxu0 0.0
        %1145 = vmatpush1.msra.mxu0 0.0
        %1146 = vmatprep.subr.mxu0 0.0
        %1147 = vmatpush1.msra.mxu0 0.0
        %1148 = vmatprep.subr.mxu0 0.0
        %1149 = vmatpush1.msra.mxu0 0.0
        %1150 = vmatprep.subr.mxu0 0.0
        %1151 = vmatpush1.msra.mxu0 0.0
        %1152 = vmatprep.subr.mxu0 0.0
        %1153 = vmatpush1.msra.mxu0 0.0
        %1154 = vmatprep.subr.mxu0 0.0
        %1155 = vmatpush1.msra.mxu0 0.0
        %1156 = vmatprep.subr.mxu0 0.0
        %1157 = vmatpush1.msra.mxu0 0.0
        %1158 = vmatprep.mubr.f32.mxu0 0.0
        %1159 = vmatmul.mubr.f32.gmra.mrb[0].mxu0 %v1012
        %v1160 = vpop.f32.mrb[0].mxu0
        %v1161 = vadd.f32 0.0, %v1160
        %v1162 = vpop.f32.mrb[0].mxu0
        %1163 = vdwg.mxu0
        %v1164 = vadd.f32 %v996, %v1090
        %v1165 = vadd.f32 %v997, %v1092
        %v1166 = vadd.f32 %v998, %v1161
        %1167 = vrot.lane.b32.xlu0 %v169, 92
        %v1168 = vpop.permute.xlu0 %1167
        %1169 = vrot.lane.b32.xlu0 %v174, 92
        %v1170 = vpop.permute.xlu0 %1169
        %1171 = vrot.lane.b32.xlu0 %v170, 92
        %v1172 = vpop.permute.xlu0 %1171
        %vm1173 = vcmp.lt.s32.totalorder %v183, 92
        %v1174 = vsel %vm1173, %v1170, %v1172
        %v1175 = vsel %vm1173, %v1168, %v1170
        %v1176 = vsel %vm1173, %v1172, %v1168
        %s1177 = scalar_lea.vmem %s1, 48
        %v1178 = vld [vmem:[%s1177] sm:$0xff]
        %v1180 = vsel %vm190, %v1178, 0
        %v1183 = vsel %vm194, %v1175, 0
        %v1186 = vsel %vm194, %v1174, 0
        %v1189 = vsel %vm194, %v1176, 0
        %1191 = vmatprep.subr.mxu0 %v1186
        %1192 = vmatpush1.msra.mxu0 %v1183
        %1193 = vmatprep.subr.mxu0 0.0
        %1194 = vmatpush1.msra.mxu0 0.0
        %1195 = vmatprep.subr.mxu0 0.0
        %1196 = vmatpush1.msra.mxu0 0.0
        %1197 = vmatprep.subr.mxu0 0.0
        %1198 = vmatpush1.msra.mxu0 0.0
        %1199 = vmatprep.subr.mxu0 0.0
        %1200 = vmatpush1.msra.mxu0 0.0
        %1201 = vmatprep.subr.mxu0 0.0
        %1202 = vmatpush1.msra.mxu0 0.0
        %1203 = vmatprep.subr.mxu0 0.0
        %1204 = vmatpush1.msra.mxu0 0.0
        %1205 = vmatprep.subr.mxu0 0.0
        %1206 = vmatpush1.msra.mxu0 0.0
        %1207 = vmatprep.subr.mxu0 0.0
        %1208 = vmatpush1.msra.mxu0 0.0
        %1209 = vmatprep.subr.mxu0 0.0
        %1210 = vmatpush1.msra.mxu0 0.0
        %1211 = vmatprep.subr.mxu0 0.0
        %1212 = vmatpush1.msra.mxu0 0.0
        %1213 = vmatprep.subr.mxu0 0.0
        %1214 = vmatpush1.msra.mxu0 0.0
        %1215 = vmatprep.subr.mxu0 0.0
        %1216 = vmatpush1.msra.mxu0 0.0
        %1217 = vmatprep.subr.mxu0 0.0
        %1218 = vmatpush1.msra.mxu0 0.0
        %1219 = vmatprep.subr.mxu0 0.0
        %1220 = vmatpush1.msra.mxu0 0.0
        %1221 = vmatprep.subr.mxu0 0.0
        %1222 = vmatpush1.msra.mxu0 0.0
        %1223 = vmatprep.subr.mxu0 0.0
        %1224 = vmatpush1.msra.mxu0 0.0
        %1225 = vmatprep.subr.mxu0 0.0
        %1226 = vmatpush1.msra.mxu0 0.0
        %1227 = vmatprep.subr.mxu0 0.0
        %1228 = vmatpush1.msra.mxu0 0.0
        %1229 = vmatprep.subr.mxu0 0.0
        %1230 = vmatpush1.msra.mxu0 0.0
        %1231 = vmatprep.subr.mxu0 0.0
        %1232 = vmatpush1.msra.mxu0 0.0
        %1233 = vmatprep.subr.mxu0 0.0
        %1234 = vmatpush1.msra.mxu0 0.0
        %1235 = vmatprep.subr.mxu0 0.0
        %1236 = vmatpush1.msra.mxu0 0.0
        %1237 = vmatprep.subr.mxu0 0.0
        %1238 = vmatpush1.msra.mxu0 0.0
        %1239 = vmatprep.subr.mxu0 0.0
        %1240 = vmatpush1.msra.mxu0 0.0
        %1241 = vmatprep.subr.mxu0 0.0
        %1242 = vmatpush1.msra.mxu0 0.0
        %1243 = vmatprep.subr.mxu0 0.0
        %1244 = vmatpush1.msra.mxu0 0.0
        %1245 = vmatprep.subr.mxu0 0.0
        %1246 = vmatpush1.msra.mxu0 0.0
        %1247 = vmatprep.subr.mxu0 0.0
        %1248 = vmatpush1.msra.mxu0 0.0
        %1249 = vmatprep.subr.mxu0 0.0
        %1250 = vmatpush1.msra.mxu0 0.0
        %1251 = vmatprep.subr.mxu0 0.0
        %1252 = vmatpush1.msra.mxu0 0.0
        %1253 = vmatprep.subr.mxu0 0.0
        %1254 = vmatpush1.msra.mxu0 0.0
        %1255 = vmatprep.mubr.f32.mxu0 0.0
        %1256 = vmatmul.mubr.f32.gmra.mrb[0].mxu0 %v1180
        %v1257 = vpop.f32.mrb[0].mxu0
        %v1258 = vadd.f32 0.0, %v1257
        %v1259 = vpop.f32.mrb[0].mxu0
        %v1260 = vadd.f32 0.0, %v1259
        %1261 = vdwg.mxu0
        %1262 = vmatprep.subr.mxu0 0.0
        %1263 = vmatpush1.msra.mxu0 %v1189
        %1264 = vmatprep.subr.mxu0 0.0
        %1265 = vmatpush1.msra.mxu0 0.0
        %1266 = vmatprep.subr.mxu0 0.0
        %1267 = vmatpush1.msra.mxu0 0.0
        %1268 = vmatprep.subr.mxu0 0.0
        %1269 = vmatpush1.msra.mxu0 0.0
        %1270 = vmatprep.subr.mxu0 0.0
        %1271 = vmatpush1.msra.mxu0 0.0
        %1272 = vmatprep.subr.mxu0 0.0
        %1273 = vmatpush1.msra.mxu0 0.0
        %1274 = vmatprep.subr.mxu0 0.0
        %1275 = vmatpush1.msra.mxu0 0.0
        %1276 = vmatprep.subr.mxu0 0.0
        %1277 = vmatpush1.msra.mxu0 0.0
        %1278 = vmatprep.subr.mxu0 0.0
        %1279 = vmatpush1.msra.mxu0 0.0
        %1280 = vmatprep.subr.mxu0 0.0
        %1281 = vmatpush1.msra.mxu0 0.0
        %1282 = vmatprep.subr.mxu0 0.0
        %1283 = vmatpush1.msra.mxu0 0.0
        %1284 = vmatprep.subr.mxu0 0.0
        %1285 = vmatpush1.msra.mxu0 0.0
        %1286 = vmatprep.subr.mxu0 0.0
        %1287 = vmatpush1.msra.mxu0 0.0
        %1288 = vmatprep.subr.mxu0 0.0
        %1289 = vmatpush1.msra.mxu0 0.0
        %1290 = vmatprep.subr.mxu0 0.0
        %1291 = vmatpush1.msra.mxu0 0.0
        %1292 = vmatprep.subr.mxu0 0.0
        %1293 = vmatpush1.msra.mxu0 0.0
        %1294 = vmatprep.subr.mxu0 0.0
        %1295 = vmatpush1.msra.mxu0 0.0
        %1296 = vmatprep.subr.mxu0 0.0
        %1297 = vmatpush1.msra.mxu0 0.0
        %1298 = vmatprep.subr.mxu0 0.0
        %1299 = vmatpush1.msra.mxu0 0.0
        %1300 = vmatprep.subr.mxu0 0.0
        %1301 = vmatpush1.msra.mxu0 0.0
        %1302 = vmatprep.subr.mxu0 0.0
        %1303 = vmatpush1.msra.mxu0 0.0
        %1304 = vmatprep.subr.mxu0 0.0
        %1305 = vmatpush1.msra.mxu0 0.0
        %1306 = vmatprep.subr.mxu0 0.0
        %1307 = vmatpush1.msra.mxu0 0.0
        %1308 = vmatprep.subr.mxu0 0.0
        %1309 = vmatpush1.msra.mxu0 0.0
        %1310 = vmatprep.subr.mxu0 0.0
        %1311 = vmatpush1.msra.mxu0 0.0
        %1312 = vmatprep.subr.mxu0 0.0
        %1313 = vmatpush1.msra.mxu0 0.0
        %1314 = vmatprep.subr.mxu0 0.0
        %1315 = vmatpush1.msra.mxu0 0.0
        %1316 = vmatprep.subr.mxu0 0.0
        %1317 = vmatpush1.msra.mxu0 0.0
        %1318 = vmatprep.subr.mxu0 0.0
        %1319 = vmatpush1.msra.mxu0 0.0
        %1320 = vmatprep.subr.mxu0 0.0
        %1321 = vmatpush1.msra.mxu0 0.0
        %1322 = vmatprep.subr.mxu0 0.0
        %1323 = vmatpush1.msra.mxu0 0.0
        %1324 = vmatprep.subr.mxu0 0.0
        %1325 = vmatpush1.msra.mxu0 0.0
        %1326 = vmatprep.mubr.f32.mxu0 0.0
        %1327 = vmatmul.mubr.f32.gmra.mrb[0].mxu0 %v1180
        %v1328 = vpop.f32.mrb[0].mxu0
        %v1329 = vadd.f32 0.0, %v1328
        %v1330 = vpop.f32.mrb[0].mxu0
        %1331 = vdwg.mxu0
        %v1332 = vadd.f32 %v1164, %v1258
        %v1333 = vadd.f32 %v1165, %v1260
        %v1334 = vadd.f32 %v1166, %v1329
        %1335 = vrot.lane.b32.xlu0 %v169, 91
        %v1336 = vpop.permute.xlu0 %1335
        %1337 = vrot.lane.b32.xlu0 %v174, 91
        %v1338 = vpop.permute.xlu0 %1337
        %1339 = vrot.lane.b32.xlu0 %v170, 91
        %v1340 = vpop.permute.xlu0 %1339
        %vm1341 = vcmp.lt.s32.totalorder %v183, 91
        %v1342 = vsel %vm1341, %v1338, %v1340
        %v1343 = vsel %vm1341, %v1336, %v1338
        %v1344 = vsel %vm1341, %v1340, %v1336
        %s1345 = scalar_lea.vmem %s1, 56
        %v1346 = vld [vmem:[%s1345] sm:$0xff]
        %v1348 = vsel %vm190, %v1346, 0
        %v1351 = vsel %vm194, %v1343, 0
        %v1354 = vsel %vm194, %v1342, 0
        %v1357 = vsel %vm194, %v1344, 0
        %1359 = vmatprep.subr.mxu0 %v1354
        %1360 = vmatpush1.msra.mxu0 %v1351
        %1361 = vmatprep.subr.mxu0 0.0
        %1362 = vmatpush1.msra.mxu0 0.0
        %1363 = vmatprep.subr.mxu0 0.0
        %1364 = vmatpush1.msra.mxu0 0.0
        %1365 = vmatprep.subr.mxu0 0.0
        %1366 = vmatpush1.msra.mxu0 0.0
        %1367 = vmatprep.subr.mxu0 0.0
        %1368 = vmatpush1.msra.mxu0 0.0
        %1369 = vmatprep.subr.mxu0 0.0
        %1370 = vmatpush1.msra.mxu0 0.0
        %1371 = vmatprep.subr.mxu0 0.0
        %1372 = vmatpush1.msra.mxu0 0.0
        %1373 = vmatprep.subr.mxu0 0.0
        %1374 = vmatpush1.msra.mxu0 0.0
        %1375 = vmatprep.subr.mxu0 0.0
        %1376 = vmatpush1.msra.mxu0 0.0
        %1377 = vmatprep.subr.mxu0 0.0
        %1378 = vmatpush1.msra.mxu0 0.0
        %1379 = vmatprep.subr.mxu0 0.0
        %1380 = vmatpush1.msra.mxu0 0.0
        %1381 = vmatprep.subr.mxu0 0.0
        %1382 = vmatpush1.msra.mxu0 0.0
        %1383 = vmatprep.subr.mxu0 0.0
        %1384 = vmatpush1.msra.mxu0 0.0
        %1385 = vmatprep.subr.mxu0 0.0
        %1386 = vmatpush1.msra.mxu0 0.0
        %1387 = vmatprep.subr.mxu0 0.0
        %1388 = vmatpush1.msra.mxu0 0.0
        %1389 = vmatprep.subr.mxu0 0.0
        %1390 = vmatpush1.msra.mxu0 0.0
        %1391 = vmatprep.subr.mxu0 0.0
        %1392 = vmatpush1.msra.mxu0 0.0
        %1393 = vmatprep.subr.mxu0 0.0
        %1394 = vmatpush1.msra.mxu0 0.0
        %1395 = vmatprep.subr.mxu0 0.0
        %1396 = vmatpush1.msra.mxu0 0.0
        %1397 = vmatprep.subr.mxu0 0.0
        %1398 = vmatpush1.msra.mxu0 0.0
        %1399 = vmatprep.subr.mxu0 0.0
        %1400 = vmatpush1.msra.mxu0 0.0
        %1401 = vmatprep.subr.mxu0 0.0
        %1402 = vmatpush1.msra.mxu0 0.0
        %1403 = vmatprep.subr.mxu0 0.0
        %1404 = vmatpush1.msra.mxu0 0.0
        %1405 = vmatprep.subr.mxu0 0.0
        %1406 = vmatpush1.msra.mxu0 0.0
        %1407 = vmatprep.subr.mxu0 0.0
        %1408 = vmatpush1.msra.mxu0 0.0
        %1409 = vmatprep.subr.mxu0 0.0
        %1410 = vmatpush1.msra.mxu0 0.0
        %1411 = vmatprep.subr.mxu0 0.0
        %1412 = vmatpush1.msra.mxu0 0.0
        %1413 = vmatprep.subr.mxu0 0.0
        %1414 = vmatpush1.msra.mxu0 0.0
        %1415 = vmatprep.subr.mxu0 0.0
        %1416 = vmatpush1.msra.mxu0 0.0
        %1417 = vmatprep.subr.mxu0 0.0
        %1418 = vmatpush1.msra.mxu0 0.0
        %1419 = vmatprep.subr.mxu0 0.0
        %1420 = vmatpush1.msra.mxu0 0.0
        %1421 = vmatprep.subr.mxu0 0.0
        %1422 = vmatpush1.msra.mxu0 0.0
        %1423 = vmatprep.mubr.f32.mxu0 0.0
        %1424 = vmatmul.mubr.f32.gmra.mrb[0].mxu0 %v1348
        %v1425 = vpop.f32.mrb[0].mxu0
        %v1426 = vadd.f32 0.0, %v1425
        %v1427 = vpop.f32.mrb[0].mxu0
        %v1428 = vadd.f32 0.0, %v1427
        %1429 = vdwg.mxu0
        %1430 = vmatprep.subr.mxu0 0.0
        %1431 = vmatpush1.msra.mxu0 %v1357
        %1432 = vmatprep.subr.mxu0 0.0
        %1433 = vmatpush1.msra.mxu0 0.0
        %1434 = vmatprep.subr.mxu0 0.0
        %1435 = vmatpush1.msra.mxu0 0.0
        %1436 = vmatprep.subr.mxu0 0.0
        %1437 = vmatpush1.msra.mxu0 0.0
        %1438 = vmatprep.subr.mxu0 0.0
        %1439 = vmatpush1.msra.mxu0 0.0
        %1440 = vmatprep.subr.mxu0 0.0
        %1441 = vmatpush1.msra.mxu0 0.0
        %1442 = vmatprep.subr.mxu0 0.0
        %1443 = vmatpush1.msra.mxu0 0.0
        %1444 = vmatprep.subr.mxu0 0.0
        %1445 = vmatpush1.msra.mxu0 0.0
        %1446 = vmatprep.subr.mxu0 0.0
        %1447 = vmatpush1.msra.mxu0 0.0
        %1448 = vmatprep.subr.mxu0 0.0
        %1449 = vmatpush1.msra.mxu0 0.0
        %1450 = vmatprep.subr.mxu0 0.0
        %1451 = vmatpush1.msra.mxu0 0.0
        %1452 = vmatprep.subr.mxu0 0.0
        %1453 = vmatpush1.msra.mxu0 0.0
        %1454 = vmatprep.subr.mxu0 0.0
        %1455 = vmatpush1.msra.mxu0 0.0
        %1456 = vmatprep.subr.mxu0 0.0
        %1457 = vmatpush1.msra.mxu0 0.0
        %1458 = vmatprep.subr.mxu0 0.0
        %1459 = vmatpush1.msra.mxu0 0.0
        %1460 = vmatprep.subr.mxu0 0.0
        %1461 = vmatpush1.msra.mxu0 0.0
        %1462 = vmatprep.subr.mxu0 0.0
        %1463 = vmatpush1.msra.mxu0 0.0
        %1464 = vmatprep.subr.mxu0 0.0
        %1465 = vmatpush1.msra.mxu0 0.0
        %1466 = vmatprep.subr.mxu0 0.0
        %1467 = vmatpush1.msra.mxu0 0.0
        %1468 = vmatprep.subr.mxu0 0.0
        %1469 = vmatpush1.msra.mxu0 0.0
        %1470 = vmatprep.subr.mxu0 0.0
        %1471 = vmatpush1.msra.mxu0 0.0
        %1472 = vmatprep.subr.mxu0 0.0
        %1473 = vmatpush1.msra.mxu0 0.0
        %1474 = vmatprep.subr.mxu0 0.0
        %1475 = vmatpush1.msra.mxu0 0.0
        %1476 = vmatprep.subr.mxu0 0.0
        %1477 = vmatpush1.msra.mxu0 0.0
        %1478 = vmatprep.subr.mxu0 0.0
        %1479 = vmatpush1.msra.mxu0 0.0
        %1480 = vmatprep.subr.mxu0 0.0
        %1481 = vmatpush1.msra.mxu0 0.0
        %1482 = vmatprep.subr.mxu0 0.0
        %1483 = vmatpush1.msra.mxu0 0.0
        %1484 = vmatprep.subr.mxu0 0.0
        %1485 = vmatpush1.msra.mxu0 0.0
        %1486 = vmatprep.subr.mxu0 0.0
        %1487 = vmatpush1.msra.mxu0 0.0
        %1488 = vmatprep.subr.mxu0 0.0
        %1489 = vmatpush1.msra.mxu0 0.0
        %1490 = vmatprep.subr.mxu0 0.0
        %1491 = vmatpush1.msra.mxu0 0.0
        %1492 = vmatprep.subr.mxu0 0.0
        %1493 = vmatpush1.msra.mxu0 0.0
        %1494 = vmatprep.mubr.f32.mxu0 0.0
        %1495 = vmatmul.mubr.f32.gmra.mrb[0].mxu0 %v1348
        %v1496 = vpop.f32.mrb[0].mxu0
        %v1497 = vadd.f32 0.0, %v1496
        %v1498 = vpop.f32.mrb[0].mxu0
        %1499 = vdwg.mxu0
        %v1500 = vadd.f32 %v1332, %v1426
        %v1501 = vadd.f32 %v1333, %v1428
        %v1502 = vadd.f32 %v1334, %v1497
        %1503 = vrot.lane.b32.xlu0 %v169, 90
        %v1504 = vpop.permute.xlu0 %1503
        %1505 = vrot.lane.b32.xlu0 %v174, 90
        %v1506 = vpop.permute.xlu0 %1505
        %1507 = vrot.lane.b32.xlu0 %v170, 90
        %v1508 = vpop.permute.xlu0 %1507
        %vm1509 = vcmp.lt.s32.totalorder %v183, 90
        %v1510 = vsel %vm1509, %v1506, %v1508
        %v1511 = vsel %vm1509, %v1504, %v1506
        %v1512 = vsel %vm1509, %v1508, %v1504
        %s1513 = scalar_lea.vmem %s1, 64
        %v1514 = vld [vmem:[%s1513] sm:$0xff]
        %v1516 = vsel %vm190, %v1514, 0
        %v1519 = vsel %vm194, %v1511, 0
        %v1522 = vsel %vm194, %v1510, 0
        %v1525 = vsel %vm194, %v1512, 0
        %1527 = vmatprep.subr.mxu0 %v1522
        %1528 = vmatpush1.msra.mxu0 %v1519
        %1529 = vmatprep.subr.mxu0 0.0
        %1530 = vmatpush1.msra.mxu0 0.0
        %1531 = vmatprep.subr.mxu0 0.0
        %1532 = vmatpush1.msra.mxu0 0.0
        %1533 = vmatprep.subr.mxu0 0.0
        %1534 = vmatpush1.msra.mxu0 0.0
        %1535 = vmatprep.subr.mxu0 0.0
        %1536 = vmatpush1.msra.mxu0 0.0
        %1537 = vmatprep.subr.mxu0 0.0
        %1538 = vmatpush1.msra.mxu0 0.0
        %1539 = vmatprep.subr.mxu0 0.0
        %1540 = vmatpush1.msra.mxu0 0.0
        %1541 = vmatprep.subr.mxu0 0.0
        %1542 = vmatpush1.msra.mxu0 0.0
        %1543 = vmatprep.subr.mxu0 0.0
        %1544 = vmatpush1.msra.mxu0 0.0
        %1545 = vmatprep.subr.mxu0 0.0
        %1546 = vmatpush1.msra.mxu0 0.0
        %1547 = vmatprep.subr.mxu0 0.0
        %1548 = vmatpush1.msra.mxu0 0.0
        %1549 = vmatprep.subr.mxu0 0.0
        %1550 = vmatpush1.msra.mxu0 0.0
        %1551 = vmatprep.subr.mxu0 0.0
        %1552 = vmatpush1.msra.mxu0 0.0
        %1553 = vmatprep.subr.mxu0 0.0
        %1554 = vmatpush1.msra.mxu0 0.0
        %1555 = vmatprep.subr.mxu0 0.0
        %1556 = vmatpush1.msra.mxu0 0.0
        %1557 = vmatprep.subr.mxu0 0.0
        %1558 = vmatpush1.msra.mxu0 0.0
        %1559 = vmatprep.subr.mxu0 0.0
        %1560 = vmatpush1.msra.mxu0 0.0
        %1561 = vmatprep.subr.mxu0 0.0
        %1562 = vmatpush1.msra.mxu0 0.0
        %1563 = vmatprep.subr.mxu0 0.0
        %1564 = vmatpush1.msra.mxu0 0.0
        %1565 = vmatprep.subr.mxu0 0.0
        %1566 = vmatpush1.msra.mxu0 0.0
        %1567 = vmatprep.subr.mxu0 0.0
        %1568 = vmatpush1.msra.mxu0 0.0
        %1569 = vmatprep.subr.mxu0 0.0
        %1570 = vmatpush1.msra.mxu0 0.0
        %1571 = vmatprep.subr.mxu0 0.0
        %1572 = vmatpush1.msra.mxu0 0.0
        %1573 = vmatprep.subr.mxu0 0.0
        %1574 = vmatpush1.msra.mxu0 0.0
        %1575 = vmatprep.subr.mxu0 0.0
        %1576 = vmatpush1.msra.mxu0 0.0
        %1577 = vmatprep.subr.mxu0 0.0
        %1578 = vmatpush1.msra.mxu0 0.0
        %1579 = vmatprep.subr.mxu0 0.0
        %1580 = vmatpush1.msra.mxu0 0.0
        %1581 = vmatprep.subr.mxu0 0.0
        %1582 = vmatpush1.msra.mxu0 0.0
        %1583 = vmatprep.subr.mxu0 0.0
        %1584 = vmatpush1.msra.mxu0 0.0
        %1585 = vmatprep.subr.mxu0 0.0
        %1586 = vmatpush1.msra.mxu0 0.0
        %1587 = vmatprep.subr.mxu0 0.0
        %1588 = vmatpush1.msra.mxu0 0.0
        %1589 = vmatprep.subr.mxu0 0.0
        %1590 = vmatpush1.msra.mxu0 0.0
        %1591 = vmatprep.mubr.f32.mxu0 0.0
        %1592 = vmatmul.mubr.f32.gmra.mrb[0].mxu0 %v1516
        %v1593 = vpop.f32.mrb[0].mxu0
        %v1594 = vadd.f32 0.0, %v1593
        %v1595 = vpop.f32.mrb[0].mxu0
        %v1596 = vadd.f32 0.0, %v1595
        %1597 = vdwg.mxu0
        %1598 = vmatprep.subr.mxu0 0.0
        %1599 = vmatpush1.msra.mxu0 %v1525
        %1600 = vmatprep.subr.mxu0 0.0
        %1601 = vmatpush1.msra.mxu0 0.0
        %1602 = vmatprep.subr.mxu0 0.0
        %1603 = vmatpush1.msra.mxu0 0.0
        %1604 = vmatprep.subr.mxu0 0.0
        %1605 = vmatpush1.msra.mxu0 0.0
        %1606 = vmatprep.subr.mxu0 0.0
        %1607 = vmatpush1.msra.mxu0 0.0
        %1608 = vmatprep.subr.mxu0 0.0
        %1609 = vmatpush1.msra.mxu0 0.0
        %1610 = vmatprep.subr.mxu0 0.0
        %1611 = vmatpush1.msra.mxu0 0.0
        %1612 = vmatprep.subr.mxu0 0.0
        %1613 = vmatpush1.msra.mxu0 0.0
        %1614 = vmatprep.subr.mxu0 0.0
        %1615 = vmatpush1.msra.mxu0 0.0
        %1616 = vmatprep.subr.mxu0 0.0
        %1617 = vmatpush1.msra.mxu0 0.0
        %1618 = vmatprep.subr.mxu0 0.0
        %1619 = vmatpush1.msra.mxu0 0.0
        %1620 = vmatprep.subr.mxu0 0.0
        %1621 = vmatpush1.msra.mxu0 0.0
        %1622 = vmatprep.subr.mxu0 0.0
        %1623 = vmatpush1.msra.mxu0 0.0
        %1624 = vmatprep.subr.mxu0 0.0
        %1625 = vmatpush1.msra.mxu0 0.0
        %1626 = vmatprep.subr.mxu0 0.0
        %1627 = vmatpush1.msra.mxu0 0.0
        %1628 = vmatprep.subr.mxu0 0.0
        %1629 = vmatpush1.msra.mxu0 0.0
        %1630 = vmatprep.subr.mxu0 0.0
        %1631 = vmatpush1.msra.mxu0 0.0
        %1632 = vmatprep.subr.mxu0 0.0
        %1633 = vmatpush1.msra.mxu0 0.0
        %1634 = vmatprep.subr.mxu0 0.0
        %1635 = vmatpush1.msra.mxu0 0.0
        %1636 = vmatprep.subr.mxu0 0.0
        %1637 = vmatpush1.msra.mxu0 0.0
        %1638 = vmatprep.subr.mxu0 0.0
        %1639 = vmatpush1.msra.mxu0 0.0
        %1640 = vmatprep.subr.mxu0 0.0
        %1641 = vmatpush1.msra.mxu0 0.0
        %1642 = vmatprep.subr.mxu0 0.0
        %1643 = vmatpush1.msra.mxu0 0.0
        %1644 = vmatprep.subr.mxu0 0.0
        %1645 = vmatpush1.msra.mxu0 0.0
        %1646 = vmatprep.subr.mxu0 0.0
        %1647 = vmatpush1.msra.mxu0 0.0
        %1648 = vmatprep.subr.mxu0 0.0
        %1649 = vmatpush1.msra.mxu0 0.0
        %1650 = vmatprep.subr.mxu0 0.0
        %1651 = vmatpush1.msra.mxu0 0.0
        %1652 = vmatprep.subr.mxu0 0.0
        %1653 = vmatpush1.msra.mxu0 0.0
        %1654 = vmatprep.subr.mxu0 0.0
        %1655 = vmatpush1.msra.mxu0 0.0
        %1656 = vmatprep.subr.mxu0 0.0
        %1657 = vmatpush1.msra.mxu0 0.0
        %1658 = vmatprep.subr.mxu0 0.0
        %1659 = vmatpush1.msra.mxu0 0.0
        %1660 = vmatprep.subr.mxu0 0.0
        %1661 = vmatpush1.msra.mxu0 0.0
        %1662 = vmatprep.mubr.f32.mxu0 0.0
        %1663 = vmatmul.mubr.f32.gmra.mrb[0].mxu0 %v1516
        %v1664 = vpop.f32.mrb[0].mxu0
        %v1665 = vadd.f32 0.0, %v1664
        %v1666 = vpop.f32.mrb[0].mxu0
        %1667 = vdwg.mxu0
        %v1668 = vadd.f32 %v1500, %v1594
        %v1669 = vadd.f32 %v1501, %v1596
        %v1670 = vadd.f32 %v1502, %v1665
        %v1671 = vld [vmem:[%s2] sm:$0xff]
        %1673 = vset.pattern.permute.xlu0 0
        %1674 = vperm.xlu0 %1673, %v1671
        %v1675 = vpop.permute.xlu0 %1674
        %v1677 = vadd.f32 %v1668, %v1675
        %v1678 = vadd.f32 %v1669, %v1675
        %v1679 = vadd.f32 %v1670, %v1675
        %v1680 = vmax.f32 %v1677, 0.0
        %v1681 = vmax.f32 %v1678, 0.0
        %v1682 = vmax.f32 %v1679, 0.0
        %1683 = vst [vmem:[%s163] sm:$0xff] %v1680
        %1684 = vst [vmem:[%s163 + $0x8] sm:$0xff] %v1681
        %1685 = vst [vmem:[%s163 + $0x10] sm:$0xff] %v1682
        %s1686 = sand.u32 %s93, 1
        %s1687 = scalar_lea.sflag [#allocation3], %s1686
        %s1688 = sand.u32 %s93, 1
        %s1689 = smul.addr %s1688, 24
        %s1690 = scalar_lea.vmem [#allocation2], %s1689
        // Predicated region
        $region33: #{tpu_custom_call.1} parent=31 // pred_check
          %p1691 = pneg %p103
        $region34: #{tpu_custom_call.1} parent=31 // pred_check_branch
          %1693 = sbr.rel (%p1691) target = $region36
        $region35: #{tpu_custom_call.1} parent=31 // pred_region
          %s1695 = ssub.s32 384, 384
          %1696 = vsyncadd %s1687, %s1695
          %s1697 = smul.addr %s17, 3
          %s1698 = smul.addr %s1697, 128
          %s1699 = scalar_lea.hbm %s3, %s1698
          %s1701 = sshll.u32 %s1690, 4
          %s1702 = int_to_ptr.vmem [resolvable:$true] %s1701
          %1704 = dma.vmem_to_hbm [thread:$0]  %s1702, 384, %s1699, %s1687
        $region36: #{tpu_custom_call.1} parent=31 // pred_fallthru
          _
      $region32: #{tpu_custom_call.1} parent=5 // pred_fallthru
        _
      %p1705 = scmp.le.s32.totalorder 2, %s12
      // Predicated region
      $region37: #{tpu_custom_call.1} parent=5 // pred_check
        %p1706 = pneg %p1705
      $region38: #{tpu_custom_call.1} parent=5 // pred_check_branch
        %1708 = sbr.rel (%p1706) target = $region40
      $region39: #{tpu_custom_call.1} parent=5 // pred_region
        %s1709 = ssub.s32 %s12, 2
        // Predicated region
        $region41: #{tpu_custom_call.1} parent=39 // pred_check
          %p1710 = pneg %p109
        $region42: #{tpu_custom_call.1} parent=39 // pred_check_branch
          %1712 = sbr.rel (%p1710) target = $region44
        $region43: #{tpu_custom_call.1} parent=39 // pred_region
          %s1713 = sand.u32 %s94, 1
          %s1714 = scalar_lea.sflag [#allocation3], %s1713
          %s1715 = sand.u32 %s94, 1
          %s1716 = smul.addr %s1715, 24
          %s1717 = scalar_lea.vmem [#allocation2], %s1716
          %1718 = dma.done %s1714, 384
        $region44: #{tpu_custom_call.1} parent=39 // pred_fallthru
          _
      $region40: #{tpu_custom_call.1} parent=5 // pred_fallthru
        _
    $region6: #{tpu_custom_call.1} parent=1 // loop_footer
      %s16 = sadd.s32 1, %s12
    $region7: #{tpu_custom_call.1} parent=1 // loop_footer_branch
      %11 = sbr.rel target = $region3
    $region8: #{tpu_custom_call.1} parent=1 // loop_exit
      _
    %1719 = vsyncpa [#allocation3], 1
    %s1720 = scalar_lea.sflag [#allocation3], 1
    %1721 = vsyncpa %s1720, 1

</llo_original>
